<compile_context>
chip_gen: v6e
topology: v6e:2x2x1
jax: 0.10.0
libtpu: 0.0.40
codegen_flags: <defaults>
</compile_context>

<pallas_src>
import math

import jax
import jax.numpy as jnp
from jax.experimental import pallas as pl
from jax.experimental.pallas import tpu as pltpu

# ----- physical constants (neural_maxwell.constants) ------------------------
C_CONST = 299792458.0
EPSILON0 = 8.85418782e-12
MU0 = 4.0 * math.pi * 1e-7
OMEGA_1550 = 2.0 * math.pi * C_CONST / 1.55e-6   # rad/s at 1550 nm
PIXEL_SIZE = 0.05e-6                              # 50 nm grid
SCALE = 1e-15                                     # residual scaling used by the repo

# ----- module hyper-parameters ----------------------------------------------
SIZE = 64
SRC_X = 32
LAYER_DIMS = [SIZE, 128, 256, 256, 256, 128, SIZE]
N_LAYERS = len(LAYER_DIMS) - 1        # 6 linear layers per branch
N_HIDDEN = N_LAYERS - 1               # layers 1..5 (layer 0 is fused across branches)
J_AMP = 1.526814027933079

LANE_W = 128                          # lane-dense working width (eps, fields, output)
SLAB_D = 256                          # padded square dim of the packed hidden-weight slab

# real (in, out) dims of the hidden layers after padding the final 64-wide
# output up to 128 lanes; used for static slicing of the weight slab.
HIDDEN_DIMS = []
for _i in range(1, N_LAYERS):
    _d_in = LAYER_DIMS[_i]
    _d_out = LAYER_DIMS[_i + 1] if _i < N_LAYERS - 1 else LANE_W
    HIDDEN_DIMS.append((_d_in, _d_out))
# -> [(128,256),(256,256),(256,256),(256,128),(128,128)]


# ----------------------------------------------------------------------------
# Pallas kernel
# ----------------------------------------------------------------------------
def maxwell_kernel(eps_ref, slope_ref, w0_ref, b0_ref, wslab_ref, bslab_ref, out_ref):
    eps = eps_ref[...]        # (TB, 128) f32; lanes >= SIZE padded with 1.0
    slope = slope_ref[...]    # (TB, 128) f32; (omega/c)*sqrt(eps)*x, 0 beyond SIZE
    TB, W = eps.shape
    S = SIZE

    # ---------------- fused first layer (shared input eps) ----------------
    h0 = jnp.dot(eps.astype(jnp.bfloat16), w0_ref[...],
                 preferred_element_type=jnp.float32) + b0_ref[...]
    h0 = jnp.maximum(h0, 0.0)                               # ReLU
    A = h0[:, :LAYER_DIMS[1]]                               # (TB, 128)
    phi = h0[:, LAYER_DIMS[1]:]                             # (TB, 128)
    # TODO(synk): nn.Dropout(p=0.1 / p=0.05) is stochastic; identity here (eval mode).

    def hidden(h, layer, branch):
        d_in, d_out = HIDDEN_DIMS[layer]
        idx = branch * N_HIDDEN + layer
        # static, aligned slices of the packed slabs -> no padded-FLOP waste
        w = wslab_ref[idx, :d_in, :d_out]                   # (d_in, d_out) bf16
        b = bslab_ref[idx][:, :d_out]                       # (1, d_out)    f32
        return jnp.dot(h.astype(jnp.bfloat16), w,
                       preferred_element_type=jnp.float32) + b

    # ---------------- amplitude MLP ----------------
    for i in range(N_HIDDEN):
        A = hidden(A, i, 0)
        if i < N_HIDDEN - 1:
            A = jnp.maximum(A, 0.0)
        else:
            # ELU(A) + 1 + 0.1  (exp-1 instead of expm1: lowering-safe; abs error ~1e-7)
            A = jnp.where(A > 0.0, A, jnp.exp(jnp.minimum(A, 0.0)) - 1.0) + 1.1

    # ---------------- phase MLP ----------------
    for i in range(N_HIDDEN):
        phi = hidden(phi, i, 1)
        if i < N_HIDDEN - 1:
            phi = jnp.maximum(phi, 0.0)
        else:
            phi = (2.0 * math.pi) * jnp.tanh(phi)

    # A, phi are (TB, 128); lanes >= SIZE come from zero-padded last-layer weights.
    lane = jax.lax.broadcasted_iota(jnp.int32, (TB, W), 1)
    in_dom = lane < S

    # fields = A * cos(slope + phi), zero outside the domain
    fields = jnp.where(in_dom, A * jnp.cos(slope + phi), 0.0)     # (TB, 128)

    # zero-BC second difference d2[k] = f[k-1] - 2 f[k] + f[k+1]; the zero
    # padding in lanes >= SIZE supplies both boundary zeros via the wrap.
    f_left = pltpu.roll(fields, shift=1, axis=1)            # fields[k-1]
    f_right = pltpu.roll(fields, shift=W - 1, axis=1)       # fields[k+1]
    d2 = f_left - 2.0 * fields + f_right

    c1 = SCALE / (PIXEL_SIZE * PIXEL_SIZE)
    c2 = SCALE * (-(OMEGA_1550 ** 2)) * MU0 * EPSILON0
    j_vec = jnp.where(lane == SRC_X, J_AMP, 0.0)

    # residual = curl_curl_E - epsilon_E - J   (valid in lanes < SIZE)
    core = c1 * d2 - (c2 * eps) * fields - j_vec

    # ---------------- A / epsilon total-variation regularizer ----------------
    tv_mask = lane <= S - 2
    dA = jnp.where(tv_mask, pltpu.roll(A, shift=W - 1, axis=1) - A, 0.0)
    deps = jnp.where(tv_mask, pltpu.roll(eps, shift=W - 1, axis=1) - eps, 0.0)
    A_var = jnp.sum(jnp.abs(dA), axis=-1, keepdims=True)         # (TB, 1)
    eps_var = jnp.sum(jnp.abs(deps), axis=-1, keepdims=True)     # (TB, 1)
    factor = 0.1 / (1.0 + eps_var)

    # Lane-dense single store (wrapper slices [:, :SIZE+2]):
    #   lanes 0..S-1 : interior residual; lane S: 0; lane S+1: factor*A_var
    #   (factor*phi_var is discarded by torch's out[:, 1:-1] slicing).
    out_ref[...] = (jnp.where(in_dom, core, 0.0)
                    + jnp.where(lane == S + 1, factor * A_var, 0.0))


# ----------------------------------------------------------------------------
# Parameter construction / kernel-layout preparation
# ----------------------------------------------------------------------------
def init_params(key):
    """Deterministic torch-default-style init. Weights returned as (in, out)."""
    def init_linear(k, fan_in, fan_out):
        kw, kb = jax.random.split(k)
        bound = 1.0 / math.sqrt(fan_in)
        w = jax.random.uniform(kw, (fan_in, fan_out), jnp.float32, -bound, bound)
        b = jax.random.uniform(kb, (1, fan_out), jnp.float32, -bound, bound)
        return w, b

    keys = jax.random.split(key, 2 * N_LAYERS)
    Wa, ba, Wp, bp = [], [], [], []
    for i in range(N_LAYERS):
        w, b = init_linear(keys[i], LAYER_DIMS[i], LAYER_DIMS[i + 1])
        Wa.append(w); ba.append(b)
        w, b = init_linear(keys[N_LAYERS + i], LAYER_DIMS[i], LAYER_DIMS[i + 1])
        Wp.append(w); bp.append(b)
    return tuple(Wa), tuple(ba), tuple(Wp), tuple(bp)


def prepare_kernel_params(params):
    """Fuse layer 0 of both branches; pack hidden layers into two zero-padded slabs."""
    Wa, ba, Wp, bp = params
    # fused layer 0: (64, 256) -> input-padded to (128, 256), bf16
    w0 = jnp.concatenate([Wa[0], Wp[0]], axis=1)
    w0 = jnp.pad(w0, ((0, LANE_W - SIZE), (0, 0))).astype(jnp.bfloat16)
    b0 = jnp.concatenate([ba[0], bp[0]], axis=1).astype(jnp.float32)       # (1, 256)

    # hidden layers 1..5, amp rows 0..4 then phi rows 5..9, zero-padded to 256x256
    w_rows, b_rows = [], []
    for W_, b_ in ((Wa, ba), (Wp, bp)):
        for i in range(1, N_LAYERS):
            w = jnp.pad(W_[i], ((0, SLAB_D - W_[i].shape[0]),
                                (0, SLAB_D - W_[i].shape[1])))
            b = jnp.pad(b_[i], ((0, 0), (0, SLAB_D - b_[i].shape[1])))
            w_rows.append(w.astype(jnp.bfloat16))
            b_rows.append(b.astype(jnp.float32))
    w_slab = jnp.stack(w_rows, axis=0)        # (10, 256, 256) bf16  (~1.25 MiB)
    b_slab = jnp.stack(b_rows, axis=0)        # (10, 1, 256)   f32
    return w0, b0, w_slab, b_slab


def _cdiv(a, b):
    return (a + b - 1) // b


def _round_up(x, m):
    return _cdiv(x, m) * m


def _choose_tiling(batch):
    """tile_b multiple of 8, capped at 512, and >=2 grid steps whenever possible
    (so v7x's two TensorCores both get work via the 'parallel' grid axis)."""
    b8 = _round_up(max(batch, 1), 8)
    if b8 <= 8:
        return b8, b8
    n_steps = max(2, _cdiv(b8, 512))
    tile_b = _round_up(_cdiv(b8, n_steps), 8)
    return tile_b, n_steps * tile_b


# ----------------------------------------------------------------------------
# Wrapper
# ----------------------------------------------------------------------------
def maxwell_dense_forward(epsilons, kparams):
    w0, b0, w_slab, b_slab = kparams
    B = epsilons.shape[0]
    tile_b, B_pad = _choose_tiling(B)

    eps_p = jnp.pad(epsilons.astype(jnp.float32),
                    ((0, B_pad - B), (0, LANE_W - SIZE)), constant_values=1.0)

    # hoist the cosine phase slope (omega/c)*sqrt(eps)*x out of the kernel epilogue
    idx = jnp.arange(LANE_W, dtype=jnp.float32)
    xs = jnp.where(idx < SIZE, PIXEL_SIZE * (idx - SRC_X), 0.0)
    slope_p = (OMEGA_1550 / C_CONST) * jnp.sqrt(eps_p) * xs[None, :]

    row_spec = pl.BlockSpec((tile_b, LANE_W), lambda i: (i, 0))
    in_specs = [
        row_spec,                                                # eps   (tiled)
        row_spec,                                                # slope (tiled)
        pl.BlockSpec(w0.shape, lambda i: (0, 0)),                # resident constants
        pl.BlockSpec(b0.shape, lambda i: (0, 0)),
        pl.BlockSpec(w_slab.shape, lambda i: (0, 0, 0)),
        pl.BlockSpec(b_slab.shape, lambda i: (0, 0, 0)),
    ]

    # advisory cost estimate (true per-row MACs, padding excluded)
    macs_per_row = LANE_W * 256                                  # fused first layer
    for d_in, d_out in HIDDEN_DIMS:
        macs_per_row += 2 * d_in * d_out                         # both branches
    weight_bytes = 2 * (w0.size + w_slab.size) + 4 * (b0.size + b_slab.size)
    bytes_acc = int(weight_bytes + 3 * B_pad * LANE_W * 4)

    vmem_limit = (16 if tile_b <= 256 else 24) * 1024 * 1024

    out = pl.pallas_call(
        maxwell_kernel,
        out_shape=jax.ShapeDtypeStruct((B_pad, LANE_W), jnp.float32),
        grid=(B_pad // tile_b,),
        in_specs=in_specs,
        out_specs=pl.BlockSpec((tile_b, LANE_W), lambda i: (i, 0)),
        compiler_params=pltpu.CompilerParams(
            dimension_semantics=("parallel",),
            vmem_limit_bytes=vmem_limit),
        cost_estimate=pl.CostEstimate(
            flops=int(2 * B_pad * macs_per_row),
            transcendentals=int(4 * B_pad * LANE_W),
            bytes_accessed=bytes_acc),
    )(eps_p, slope_p, w0, b0, w_slab, b_slab)

    return out[:B, :SIZE + 2]


if __name__ == "__main__":
    key = jax.random.PRNGKey(0)
    k_eps, k_prm = jax.random.split(key)

    batch = 4
    # physically sensible permittivities in [1, 4)
    epsilons = 1.0 + 3.0 * jax.random.uniform(k_eps, (batch, SIZE), dtype=jnp.float32)
    raw_params = init_params(k_prm)
    kparams = prepare_kernel_params(raw_params)

    out = jax.jit(maxwell_dense_forward)(epsilons, kparams)
    out = jax.block_until_ready(out)

    assert out.shape == (batch, SIZE + 2), out.shape
    assert bool(jnp.all(jnp.isfinite(out)))
    print("KERNEL_OK")
</pallas_src>

<mosaic_0001>
module attributes {stable_mosaic.version = 11 : i64} {
  func.func @maxwell_kernel(%arg0: i32, %arg1: memref<8x128xf32, #tpu.memory_space<vmem>>, %arg2: memref<8x128xf32, #tpu.memory_space<vmem>>, %arg3: memref<128x256xbf16, #tpu.memory_space<vmem>>, %arg4: memref<1x256xf32, #tpu.memory_space<vmem>>, %arg5: memref<10x256x256xbf16, #tpu.memory_space<vmem>>, %arg6: memref<10x1x256xf32, #tpu.memory_space<vmem>>, %arg7: memref<8x128xf32, #tpu.memory_space<vmem>>) attributes {dimension_semantics = [#tpu.dimension_semantics<parallel>], iteration_bounds = array<i64: 1>, scalar_prefetch = 0 : i64, scratch_operands = 0 : i64, tpu.core_type = #tpu.core_type<tc>, window_params = [{transform_indices = @transform_0, window_bounds = array<i64: 8, 128>}, {transform_indices = @transform_1, window_bounds = array<i64: 8, 128>}, {pipeline_mode = #tpu.pipeline_mode<synchronous>, transform_indices = @transform_2, window_bounds = array<i64: 128, 256>}, {pipeline_mode = #tpu.pipeline_mode<synchronous>, transform_indices = @transform_3, window_bounds = array<i64: 1, 256>}, {pipeline_mode = #tpu.pipeline_mode<synchronous>, transform_indices = @transform_4, window_bounds = array<i64: 10, 256, 256>}, {pipeline_mode = #tpu.pipeline_mode<synchronous>, transform_indices = @transform_5, window_bounds = array<i64: 10, 1, 256>}, {transform_indices = @transform_6, window_bounds = array<i64: 8, 128>}]} {
    %c0 = arith.constant 0 : index
    %c0_0 = arith.constant 0 : index
    %0 = vector.load %arg1[%c0, %c0_0] : memref<8x128xf32, #tpu.memory_space<vmem>>, vector<8x128xf32>
    %c0_1 = arith.constant 0 : index
    %c0_2 = arith.constant 0 : index
    %1 = vector.load %arg2[%c0_1, %c0_2] : memref<8x128xf32, #tpu.memory_space<vmem>>, vector<8x128xf32>
    %2 = arith.truncf %0 : vector<8x128xf32> to vector<8x128xbf16>
    %c0_3 = arith.constant 0 : index
    %c0_4 = arith.constant 0 : index
    %3 = vector.load %arg3[%c0_3, %c0_4] : memref<128x256xbf16, #tpu.memory_space<vmem>>, vector<128x256xbf16>
    %cst = arith.constant dense<0.000000e+00> : vector<8x256xf32>
    %4 = tpu.matmul %2, %3, %cst {dimension_numbers = #tpu.dot_dimension_numbers<[1], [0], [0], [1], [0, 0, 1, 1], [], []>} : vector<8x128xbf16>, vector<128x256xbf16>, vector<8x256xf32> -> vector<8x256xf32>
    %c0_5 = arith.constant 0 : index
    %c0_6 = arith.constant 0 : index
    %5 = vector.load %arg4[%c0_5, %c0_6] : memref<1x256xf32, #tpu.memory_space<vmem>>, vector<1x256xf32>
    %6 = vector.broadcast %5 : vector<1x256xf32> to vector<8x256xf32>
    %7 = arith.addf %4, %6 : vector<8x256xf32>
    %cst_7 = arith.constant 0.000000e+00 : f32
    %8 = vector.broadcast %cst_7 : f32 to vector<8x256xf32>
    %9 = arith.maximumf %7, %8 : vector<8x256xf32>
    %10 = vector.extract_strided_slice %9 {offsets = [0, 0], sizes = [8, 128], strides = [1, 1]} : vector<8x256xf32> to vector<8x128xf32>
    %11 = vector.extract_strided_slice %9 {offsets = [0, 128], sizes = [8, 128], strides = [1, 1]} : vector<8x256xf32> to vector<8x128xf32>
    %c0_8 = arith.constant 0 : index
    %c0_9 = arith.constant 0 : index
    %c0_10 = arith.constant 0 : index
    %12 = vector.load %arg5[%c0_8, %c0_9, %c0_10] : memref<10x256x256xbf16, #tpu.memory_space<vmem>>, vector<1x128x256xbf16>
    %13 = vector.shape_cast %12 : vector<1x128x256xbf16> to vector<128x256xbf16>
    %c0_11 = arith.constant 0 : index
    %c0_12 = arith.constant 0 : index
    %c0_13 = arith.constant 0 : index
    %14 = vector.load %arg6[%c0_11, %c0_12, %c0_13] : memref<10x1x256xf32, #tpu.memory_space<vmem>>, vector<1x1x256xf32>
    %15 = vector.shape_cast %14 : vector<1x1x256xf32> to vector<1x256xf32>
    %16 = arith.truncf %10 : vector<8x128xf32> to vector<8x128xbf16>
    %cst_14 = arith.constant dense<0.000000e+00> : vector<8x256xf32>
    %17 = tpu.matmul %16, %13, %cst_14 {dimension_numbers = #tpu.dot_dimension_numbers<[1], [0], [0], [1], [0, 0, 1, 1], [], []>} : vector<8x128xbf16>, vector<128x256xbf16>, vector<8x256xf32> -> vector<8x256xf32>
    %18 = vector.broadcast %15 : vector<1x256xf32> to vector<8x256xf32>
    %19 = arith.addf %17, %18 : vector<8x256xf32>
    %cst_15 = arith.constant 0.000000e+00 : f32
    %20 = vector.broadcast %cst_15 : f32 to vector<8x256xf32>
    %21 = arith.maximumf %19, %20 : vector<8x256xf32>
    %c1 = arith.constant 1 : index
    %c0_16 = arith.constant 0 : index
    %c0_17 = arith.constant 0 : index
    %22 = vector.load %arg5[%c1, %c0_16, %c0_17] : memref<10x256x256xbf16, #tpu.memory_space<vmem>>, vector<1x256x256xbf16>
    %23 = vector.shape_cast %22 : vector<1x256x256xbf16> to vector<256x256xbf16>
    %c1_18 = arith.constant 1 : index
    %c0_19 = arith.constant 0 : index
    %c0_20 = arith.constant 0 : index
    %24 = vector.load %arg6[%c1_18, %c0_19, %c0_20] : memref<10x1x256xf32, #tpu.memory_space<vmem>>, vector<1x1x256xf32>
    %25 = vector.shape_cast %24 : vector<1x1x256xf32> to vector<1x256xf32>
    %26 = arith.truncf %21 : vector<8x256xf32> to vector<8x256xbf16>
    %cst_21 = arith.constant dense<0.000000e+00> : vector<8x256xf32>
    %27 = tpu.matmul %26, %23, %cst_21 {dimension_numbers = #tpu.dot_dimension_numbers<[1], [0], [0], [1], [0, 0, 1, 1], [], []>} : vector<8x256xbf16>, vector<256x256xbf16>, vector<8x256xf32> -> vector<8x256xf32>
    %28 = vector.broadcast %25 : vector<1x256xf32> to vector<8x256xf32>
    %29 = arith.addf %27, %28 : vector<8x256xf32>
    %cst_22 = arith.constant 0.000000e+00 : f32
    %30 = vector.broadcast %cst_22 : f32 to vector<8x256xf32>
    %31 = arith.maximumf %29, %30 : vector<8x256xf32>
    %c2 = arith.constant 2 : index
    %c0_23 = arith.constant 0 : index
    %c0_24 = arith.constant 0 : index
    %32 = vector.load %arg5[%c2, %c0_23, %c0_24] : memref<10x256x256xbf16, #tpu.memory_space<vmem>>, vector<1x256x256xbf16>
    %33 = vector.shape_cast %32 : vector<1x256x256xbf16> to vector<256x256xbf16>
    %c2_25 = arith.constant 2 : index
    %c0_26 = arith.constant 0 : index
    %c0_27 = arith.constant 0 : index
    %34 = vector.load %arg6[%c2_25, %c0_26, %c0_27] : memref<10x1x256xf32, #tpu.memory_space<vmem>>, vector<1x1x256xf32>
    %35 = vector.shape_cast %34 : vector<1x1x256xf32> to vector<1x256xf32>
    %36 = arith.truncf %31 : vector<8x256xf32> to vector<8x256xbf16>
    %cst_28 = arith.constant dense<0.000000e+00> : vector<8x256xf32>
    %37 = tpu.matmul %36, %33, %cst_28 {dimension_numbers = #tpu.dot_dimension_numbers<[1], [0], [0], [1], [0, 0, 1, 1], [], []>} : vector<8x256xbf16>, vector<256x256xbf16>, vector<8x256xf32> -> vector<8x256xf32>
    %38 = vector.broadcast %35 : vector<1x256xf32> to vector<8x256xf32>
    %39 = arith.addf %37, %38 : vector<8x256xf32>
    %cst_29 = arith.constant 0.000000e+00 : f32
    %40 = vector.broadcast %cst_29 : f32 to vector<8x256xf32>
    %41 = arith.maximumf %39, %40 : vector<8x256xf32>
    %c3 = arith.constant 3 : index
    %c0_30 = arith.constant 0 : index
    %c0_31 = arith.constant 0 : index
    %42 = vector.load %arg5[%c3, %c0_30, %c0_31] : memref<10x256x256xbf16, #tpu.memory_space<vmem>>, vector<1x256x128xbf16>
    %43 = vector.shape_cast %42 : vector<1x256x128xbf16> to vector<256x128xbf16>
    %c3_32 = arith.constant 3 : index
    %c0_33 = arith.constant 0 : index
    %c0_34 = arith.constant 0 : index
    %44 = vector.load %arg6[%c3_32, %c0_33, %c0_34] : memref<10x1x256xf32, #tpu.memory_space<vmem>>, vector<1x1x256xf32>
    %45 = vector.shape_cast %44 : vector<1x1x256xf32> to vector<1x256xf32>
    %46 = vector.extract_strided_slice %45 {offsets = [0, 0], sizes = [1, 128], strides = [1, 1]} : vector<1x256xf32> to vector<1x128xf32>
    %47 = arith.truncf %41 : vector<8x256xf32> to vector<8x256xbf16>
    %cst_35 = arith.constant dense<0.000000e+00> : vector<8x128xf32>
    %48 = tpu.matmul %47, %43, %cst_35 {dimension_numbers = #tpu.dot_dimension_numbers<[1], [0], [0], [1], [0, 0, 1, 1], [], []>} : vector<8x256xbf16>, vector<256x128xbf16>, vector<8x128xf32> -> vector<8x128xf32>
    %49 = vector.broadcast %46 : vector<1x128xf32> to vector<8x128xf32>
    %50 = arith.addf %48, %49 : vector<8x128xf32>
    %cst_36 = arith.constant 0.000000e+00 : f32
    %51 = vector.broadcast %cst_36 : f32 to vector<8x128xf32>
    %52 = arith.maximumf %50, %51 : vector<8x128xf32>
    %c4 = arith.constant 4 : index
    %c0_37 = arith.constant 0 : index
    %c0_38 = arith.constant 0 : index
    %53 = vector.load %arg5[%c4, %c0_37, %c0_38] : memref<10x256x256xbf16, #tpu.memory_space<vmem>>, vector<1x128x128xbf16>
    %54 = vector.shape_cast %53 : vector<1x128x128xbf16> to vector<128x128xbf16>
    %c4_39 = arith.constant 4 : index
    %c0_40 = arith.constant 0 : index
    %c0_41 = arith.constant 0 : index
    %55 = vector.load %arg6[%c4_39, %c0_40, %c0_41] : memref<10x1x256xf32, #tpu.memory_space<vmem>>, vector<1x1x256xf32>
    %56 = vector.shape_cast %55 : vector<1x1x256xf32> to vector<1x256xf32>
    %57 = vector.extract_strided_slice %56 {offsets = [0, 0], sizes = [1, 128], strides = [1, 1]} : vector<1x256xf32> to vector<1x128xf32>
    %58 = arith.truncf %52 : vector<8x128xf32> to vector<8x128xbf16>
    %cst_42 = arith.constant dense<0.000000e+00> : vector<8x128xf32>
    %59 = tpu.matmul %58, %54, %cst_42 {dimension_numbers = #tpu.dot_dimension_numbers<[1], [0], [0], [1], [0, 0, 1, 1], [], []>} : vector<8x128xbf16>, vector<128x128xbf16>, vector<8x128xf32> -> vector<8x128xf32>
    %60 = vector.broadcast %57 : vector<1x128xf32> to vector<8x128xf32>
    %61 = arith.addf %59, %60 : vector<8x128xf32>
    %cst_43 = arith.constant 0.000000e+00 : f32
    %62 = vector.broadcast %cst_43 : f32 to vector<8x128xf32>
    %63 = arith.cmpf ogt, %61, %62 : vector<8x128xf32>
    %cst_44 = arith.constant 0.000000e+00 : f32
    %64 = vector.broadcast %cst_44 : f32 to vector<8x128xf32>
    %65 = arith.minimumf %61, %64 : vector<8x128xf32>
    %66 = math.exp %65 : vector<8x128xf32>
    %cst_45 = arith.constant 1.000000e+00 : f32
    %67 = vector.broadcast %cst_45 : f32 to vector<8x128xf32>
    %68 = arith.subf %66, %67 : vector<8x128xf32>
    %69 = arith.select %63, %61, %68 : vector<8x128xi1>, vector<8x128xf32>
    %cst_46 = arith.constant 1.100000e+00 : f32
    %70 = vector.broadcast %cst_46 : f32 to vector<8x128xf32>
    %71 = arith.addf %69, %70 : vector<8x128xf32>
    %c5 = arith.constant 5 : index
    %c0_47 = arith.constant 0 : index
    %c0_48 = arith.constant 0 : index
    %72 = vector.load %arg5[%c5, %c0_47, %c0_48] : memref<10x256x256xbf16, #tpu.memory_space<vmem>>, vector<1x128x256xbf16>
    %73 = vector.shape_cast %72 : vector<1x128x256xbf16> to vector<128x256xbf16>
    %c5_49 = arith.constant 5 : index
    %c0_50 = arith.constant 0 : index
    %c0_51 = arith.constant 0 : index
    %74 = vector.load %arg6[%c5_49, %c0_50, %c0_51] : memref<10x1x256xf32, #tpu.memory_space<vmem>>, vector<1x1x256xf32>
    %75 = vector.shape_cast %74 : vector<1x1x256xf32> to vector<1x256xf32>
    %76 = arith.truncf %11 : vector<8x128xf32> to vector<8x128xbf16>
    %cst_52 = arith.constant dense<0.000000e+00> : vector<8x256xf32>
    %77 = tpu.matmul %76, %73, %cst_52 {dimension_numbers = #tpu.dot_dimension_numbers<[1], [0], [0], [1], [0, 0, 1, 1], [], []>} : vector<8x128xbf16>, vector<128x256xbf16>, vector<8x256xf32> -> vector<8x256xf32>
    %78 = vector.broadcast %75 : vector<1x256xf32> to vector<8x256xf32>
    %79 = arith.addf %77, %78 : vector<8x256xf32>
    %cst_53 = arith.constant 0.000000e+00 : f32
    %80 = vector.broadcast %cst_53 : f32 to vector<8x256xf32>
    %81 = arith.maximumf %79, %80 : vector<8x256xf32>
    %c6 = arith.constant 6 : index
    %c0_54 = arith.constant 0 : index
    %c0_55 = arith.constant 0 : index
    %82 = vector.load %arg5[%c6, %c0_54, %c0_55] : memref<10x256x256xbf16, #tpu.memory_space<vmem>>, vector<1x256x256xbf16>
    %83 = vector.shape_cast %82 : vector<1x256x256xbf16> to vector<256x256xbf16>
    %c6_56 = arith.constant 6 : index
    %c0_57 = arith.constant 0 : index
    %c0_58 = arith.constant 0 : index
    %84 = vector.load %arg6[%c6_56, %c0_57, %c0_58] : memref<10x1x256xf32, #tpu.memory_space<vmem>>, vector<1x1x256xf32>
    %85 = vector.shape_cast %84 : vector<1x1x256xf32> to vector<1x256xf32>
    %86 = arith.truncf %81 : vector<8x256xf32> to vector<8x256xbf16>
    %cst_59 = arith.constant dense<0.000000e+00> : vector<8x256xf32>
    %87 = tpu.matmul %86, %83, %cst_59 {dimension_numbers = #tpu.dot_dimension_numbers<[1], [0], [0], [1], [0, 0, 1, 1], [], []>} : vector<8x256xbf16>, vector<256x256xbf16>, vector<8x256xf32> -> vector<8x256xf32>
    %88 = vector.broadcast %85 : vector<1x256xf32> to vector<8x256xf32>
    %89 = arith.addf %87, %88 : vector<8x256xf32>
    %cst_60 = arith.constant 0.000000e+00 : f32
    %90 = vector.broadcast %cst_60 : f32 to vector<8x256xf32>
    %91 = arith.maximumf %89, %90 : vector<8x256xf32>
    %c7 = arith.constant 7 : index
    %c0_61 = arith.constant 0 : index
    %c0_62 = arith.constant 0 : index
    %92 = vector.load %arg5[%c7, %c0_61, %c0_62] : memref<10x256x256xbf16, #tpu.memory_space<vmem>>, vector<1x256x256xbf16>
    %93 = vector.shape_cast %92 : vector<1x256x256xbf16> to vector<256x256xbf16>
    %c7_63 = arith.constant 7 : index
    %c0_64 = arith.constant 0 : index
    %c0_65 = arith.constant 0 : index
    %94 = vector.load %arg6[%c7_63, %c0_64, %c0_65] : memref<10x1x256xf32, #tpu.memory_space<vmem>>, vector<1x1x256xf32>
    %95 = vector.shape_cast %94 : vector<1x1x256xf32> to vector<1x256xf32>
    %96 = arith.truncf %91 : vector<8x256xf32> to vector<8x256xbf16>
    %cst_66 = arith.constant dense<0.000000e+00> : vector<8x256xf32>
    %97 = tpu.matmul %96, %93, %cst_66 {dimension_numbers = #tpu.dot_dimension_numbers<[1], [0], [0], [1], [0, 0, 1, 1], [], []>} : vector<8x256xbf16>, vector<256x256xbf16>, vector<8x256xf32> -> vector<8x256xf32>
    %98 = vector.broadcast %95 : vector<1x256xf32> to vector<8x256xf32>
    %99 = arith.addf %97, %98 : vector<8x256xf32>
    %cst_67 = arith.constant 0.000000e+00 : f32
    %100 = vector.broadcast %cst_67 : f32 to vector<8x256xf32>
    %101 = arith.maximumf %99, %100 : vector<8x256xf32>
    %c8 = arith.constant 8 : index
    %c0_68 = arith.constant 0 : index
    %c0_69 = arith.constant 0 : index
    %102 = vector.load %arg5[%c8, %c0_68, %c0_69] : memref<10x256x256xbf16, #tpu.memory_space<vmem>>, vector<1x256x128xbf16>
    %103 = vector.shape_cast %102 : vector<1x256x128xbf16> to vector<256x128xbf16>
    %c8_70 = arith.constant 8 : index
    %c0_71 = arith.constant 0 : index
    %c0_72 = arith.constant 0 : index
    %104 = vector.load %arg6[%c8_70, %c0_71, %c0_72] : memref<10x1x256xf32, #tpu.memory_space<vmem>>, vector<1x1x256xf32>
    %105 = vector.shape_cast %104 : vector<1x1x256xf32> to vector<1x256xf32>
    %106 = vector.extract_strided_slice %105 {offsets = [0, 0], sizes = [1, 128], strides = [1, 1]} : vector<1x256xf32> to vector<1x128xf32>
    %107 = arith.truncf %101 : vector<8x256xf32> to vector<8x256xbf16>
    %cst_73 = arith.constant dense<0.000000e+00> : vector<8x128xf32>
    %108 = tpu.matmul %107, %103, %cst_73 {dimension_numbers = #tpu.dot_dimension_numbers<[1], [0], [0], [1], [0, 0, 1, 1], [], []>} : vector<8x256xbf16>, vector<256x128xbf16>, vector<8x128xf32> -> vector<8x128xf32>
    %109 = vector.broadcast %106 : vector<1x128xf32> to vector<8x128xf32>
    %110 = arith.addf %108, %109 : vector<8x128xf32>
    %cst_74 = arith.constant 0.000000e+00 : f32
    %111 = vector.broadcast %cst_74 : f32 to vector<8x128xf32>
    %112 = arith.maximumf %110, %111 : vector<8x128xf32>
    %c9 = arith.constant 9 : index
    %c0_75 = arith.constant 0 : index
    %c0_76 = arith.constant 0 : index
    %113 = vector.load %arg5[%c9, %c0_75, %c0_76] : memref<10x256x256xbf16, #tpu.memory_space<vmem>>, vector<1x128x128xbf16>
    %114 = vector.shape_cast %113 : vector<1x128x128xbf16> to vector<128x128xbf16>
    %c9_77 = arith.constant 9 : index
    %c0_78 = arith.constant 0 : index
    %c0_79 = arith.constant 0 : index
    %115 = vector.load %arg6[%c9_77, %c0_78, %c0_79] : memref<10x1x256xf32, #tpu.memory_space<vmem>>, vector<1x1x256xf32>
    %116 = vector.shape_cast %115 : vector<1x1x256xf32> to vector<1x256xf32>
    %117 = vector.extract_strided_slice %116 {offsets = [0, 0], sizes = [1, 128], strides = [1, 1]} : vector<1x256xf32> to vector<1x128xf32>
    %118 = arith.truncf %112 : vector<8x128xf32> to vector<8x128xbf16>
    %cst_80 = arith.constant dense<0.000000e+00> : vector<8x128xf32>
    %119 = tpu.matmul %118, %114, %cst_80 {dimension_numbers = #tpu.dot_dimension_numbers<[1], [0], [0], [1], [0, 0, 1, 1], [], []>} : vector<8x128xbf16>, vector<128x128xbf16>, vector<8x128xf32> -> vector<8x128xf32>
    %120 = vector.broadcast %117 : vector<1x128xf32> to vector<8x128xf32>
    %121 = arith.addf %119, %120 : vector<8x128xf32>
    %122 = math.tanh %121 : vector<8x128xf32>
    %cst_81 = arith.constant 6.28318548 : f32
    %123 = vector.broadcast %cst_81 : f32 to vector<8x128xf32>
    %124 = arith.mulf %123, %122 : vector<8x128xf32>
    %125 = tpu.iota {dimensions = array<i32: 1>} : vector<8x128xi32>
    %c64_i32 = arith.constant 64 : i32
    %126 = vector.broadcast %c64_i32 : i32 to vector<8x128xi32>
    %127 = arith.cmpi slt, %125, %126 : vector<8x128xi32>
    %128 = arith.addf %1, %124 : vector<8x128xf32>
    %129 = math.cos %128 : vector<8x128xf32>
    %130 = arith.mulf %71, %129 : vector<8x128xf32>
    %cst_82 = arith.constant 0.000000e+00 : f32
    %131 = vector.broadcast %cst_82 : f32 to vector<8x128xf32>
    %132 = arith.select %127, %130, %131 : vector<8x128xi1>, vector<8x128xf32>
    %c1_i32 = arith.constant 1 : i32
    %133 = tpu.dynamic_rotate %132 by %c1_i32 dim 1 : vector<8x128xf32>, i32 -> vector<8x128xf32>
    %c127_i32 = arith.constant 127 : i32
    %134 = tpu.dynamic_rotate %132 by %c127_i32 dim 1 : vector<8x128xf32>, i32 -> vector<8x128xf32>
    %cst_83 = arith.constant 2.000000e+00 : f32
    %135 = vector.broadcast %cst_83 : f32 to vector<8x128xf32>
    %136 = arith.mulf %135, %132 : vector<8x128xf32>
    %137 = arith.subf %133, %136 : vector<8x128xf32>
    %138 = arith.addf %137, %134 : vector<8x128xf32>
    %c32_i32 = arith.constant 32 : i32
    %139 = vector.broadcast %c32_i32 : i32 to vector<8x128xi32>
    %140 = arith.cmpi eq, %125, %139 : vector<8x128xi32>
    %cst_84 = arith.constant 1.52681398 : f32
    %cst_85 = arith.constant 0.000000e+00 : f32
    %141 = vector.broadcast %cst_84 : f32 to vector<8x128xf32>
    %142 = vector.broadcast %cst_85 : f32 to vector<8x128xf32>
    %143 = arith.select %140, %141, %142 : vector<8x128xi1>, vector<8x128xf32>
    %cst_86 = arith.constant 4.000000e-01 : f32
    %144 = vector.broadcast %cst_86 : f32 to vector<8x128xf32>
    %145 = arith.mulf %144, %138 : vector<8x128xf32>
    %cst_87 = arith.constant -0.0164322238 : f32
    %146 = vector.broadcast %cst_87 : f32 to vector<8x128xf32>
    %147 = arith.mulf %146, %0 : vector<8x128xf32>
    %148 = arith.mulf %147, %132 : vector<8x128xf32>
    %149 = arith.subf %145, %148 : vector<8x128xf32>
    %150 = arith.subf %149, %143 : vector<8x128xf32>
    %c62_i32 = arith.constant 62 : i32
    %151 = vector.broadcast %c62_i32 : i32 to vector<8x128xi32>
    %152 = arith.cmpi sle, %125, %151 : vector<8x128xi32>
    %c127_i32_88 = arith.constant 127 : i32
    %153 = tpu.dynamic_rotate %71 by %c127_i32_88 dim 1 : vector<8x128xf32>, i32 -> vector<8x128xf32>
    %154 = arith.subf %153, %71 : vector<8x128xf32>
    %cst_89 = arith.constant 0.000000e+00 : f32
    %155 = vector.broadcast %cst_89 : f32 to vector<8x128xf32>
    %156 = arith.select %152, %154, %155 : vector<8x128xi1>, vector<8x128xf32>
    %c127_i32_90 = arith.constant 127 : i32
    %157 = tpu.dynamic_rotate %0 by %c127_i32_90 dim 1 : vector<8x128xf32>, i32 -> vector<8x128xf32>
    %158 = arith.subf %157, %0 : vector<8x128xf32>
    %cst_91 = arith.constant 0.000000e+00 : f32
    %159 = vector.broadcast %cst_91 : f32 to vector<8x128xf32>
    %160 = arith.select %152, %158, %159 : vector<8x128xi1>, vector<8x128xf32>
    %161 = math.absf %156 : vector<8x128xf32>
    %cst_92 = arith.constant dense<0.000000e+00> : vector<8xf32>
    %162 = vector.multi_reduction <add>, %161, %cst_92 [1] : vector<8x128xf32> to vector<8xf32>
    %163 = vector.shape_cast %162 : vector<8xf32> to vector<8x1xf32>
    %164 = math.absf %160 : vector<8x128xf32>
    %cst_93 = arith.constant dense<0.000000e+00> : vector<8xf32>
    %165 = vector.multi_reduction <add>, %164, %cst_93 [1] : vector<8x128xf32> to vector<8xf32>
    %166 = vector.shape_cast %165 : vector<8xf32> to vector<8x1xf32>
    %cst_94 = arith.constant 1.000000e+00 : f32
    %167 = vector.broadcast %cst_94 : f32 to vector<8x1xf32>
    %168 = arith.addf %167, %166 : vector<8x1xf32>
    %cst_95 = arith.constant 1.000000e-01 : f32
    %169 = vector.broadcast %cst_95 : f32 to vector<8x1xf32>
    %170 = arith.divf %169, %168 : vector<8x1xf32>
    %cst_96 = arith.constant 0.000000e+00 : f32
    %171 = vector.broadcast %cst_96 : f32 to vector<8x128xf32>
    %172 = arith.select %127, %150, %171 : vector<8x128xi1>, vector<8x128xf32>
    %c65_i32 = arith.constant 65 : i32
    %173 = vector.broadcast %c65_i32 : i32 to vector<8x128xi32>
    %174 = arith.cmpi eq, %125, %173 : vector<8x128xi32>
    %175 = arith.mulf %170, %163 : vector<8x1xf32>
    %cst_97 = arith.constant 0.000000e+00 : f32
    %176 = vector.shape_cast %175 : vector<8x1xf32> to vector<8x1xf32>
    %177 = vector.broadcast %176 : vector<8x1xf32> to vector<8x128xf32>
    %178 = vector.broadcast %cst_97 : f32 to vector<8x128xf32>
    %179 = arith.select %174, %177, %178 : vector<8x128xi1>, vector<8x128xf32>
    %180 = arith.addf %172, %179 : vector<8x128xf32>
    %c0_98 = arith.constant 0 : index
    %c0_99 = arith.constant 0 : index
    %181 = vector.load %arg7[%c0_98, %c0_99] : memref<8x128xf32, #tpu.memory_space<vmem>>, vector<8x128xf32>
    tpu.vector_store %arg7[%c0_98, %c0_99], %180 {strides = array<i32>} : memref<8x128xf32, #tpu.memory_space<vmem>>, vector<8x128xf32>,
    return
  }
  func.func @transform_0(%arg0: i32) -> (i32, i32) {
    %c0_i32 = arith.constant 0 : i32
    %c0_i32_0 = arith.constant 0 : i32
    return %arg0, %c0_i32 : i32, i32
  }
  func.func @transform_1(%arg0: i32) -> (i32, i32) {
    %c0_i32 = arith.constant 0 : i32
    %c0_i32_0 = arith.constant 0 : i32
    return %arg0, %c0_i32 : i32, i32
  }
  func.func @transform_2(%arg0: i32) -> (i32, i32) {
    %c0_i32 = arith.constant 0 : i32
    %c0_i32_0 = arith.constant 0 : i32
    %c0_i32_1 = arith.constant 0 : i32
    return %c0_i32, %c0_i32_0 : i32, i32
  }
  func.func @transform_3(%arg0: i32) -> (i32, i32) {
    %c0_i32 = arith.constant 0 : i32
    %c0_i32_0 = arith.constant 0 : i32
    %c0_i32_1 = arith.constant 0 : i32
    return %c0_i32, %c0_i32_0 : i32, i32
  }
  func.func @transform_4(%arg0: i32) -> (i32, i32, i32) {
    %c0_i32 = arith.constant 0 : i32
    %c0_i32_0 = arith.constant 0 : i32
    %c0_i32_1 = arith.constant 0 : i32
    %c0_i32_2 = arith.constant 0 : i32
    return %c0_i32, %c0_i32_0, %c0_i32_1 : i32, i32, i32
  }
  func.func @transform_5(%arg0: i32) -> (i32, i32, i32) {
    %c0_i32 = arith.constant 0 : i32
    %c0_i32_0 = arith.constant 0 : i32
    %c0_i32_1 = arith.constant 0 : i32
    %c0_i32_2 = arith.constant 0 : i32
    return %c0_i32, %c0_i32_0, %c0_i32_1 : i32, i32, i32
  }
  func.func @transform_6(%arg0: i32) -> (i32, i32) {
    %c0_i32 = arith.constant 0 : i32
    %c0_i32_0 = arith.constant 0 : i32
    return %arg0, %c0_i32 : i32, i32
  }
}

</mosaic_0001>

<llo_original>
// kernel: maxwell_dense_forward.1
$region0: #{maxwell_dense_forward.1}
  #allocation0 [shape = 'u32[]', space=smem, size = 0x4, offset = 0x4, fixed_abs, tag = 'smem constant byte address 0x4 - core index']
  #allocation1 [shape = 'u32[144,128]{1,0:T(1,128)}', space=vmem, size = 0x12000, scoped, tag = 'internal scratch']
  %s0 = inlined_call_operand.vmem [shape: f32[8,128], index: 0, kind: input, shape index: {}]
  %s1 = inlined_call_operand.vmem [shape: f32[8,128], index: 1, kind: input, shape index: {}]
  %s2 = inlined_call_operand.hbm [shape: bf16[128,256], index: 2, kind: input, shape index: {}]
  %s3 = inlined_call_operand.hbm [shape: f32[1,256], index: 3, kind: input, shape index: {}]
  %s4 = inlined_call_operand.hbm [shape: bf16[10,256,256], index: 4, kind: input, shape index: {}]
  %s5 = inlined_call_operand.hbm [shape: f32[10,1,256], index: 5, kind: input, shape index: {}]
  %s6 = inlined_call_operand.vmem [shape: f32[8,128], index: 6, kind: output, shape index: {}]
  %s7 = sld [smem:[#allocation0]]
  $region50: #{maxwell_dense_forward.1} parent=0
    _
  %s9 = ssub.s32 1, %s7
  %s10 = scalar_select 0, %s9, %s7
  $region1: #{maxwell_dense_forward.1} parent=0
    #allocation2 [shape = 'u8[65536]{0}', space=vmem, size = 0x10000, scoped, tag = 'input window, operand 2, single buffered']
    #allocation3 [shape = 's32[1]{0}', space=sflag, size = 0x4, scoped, tag = 'scoped memory for maxwell_dense_forward.1']
    #allocation4 [shape = 'u8[1024]{0}', space=vmem, size = 0x400, scoped, tag = 'input window, operand 3, single buffered']
    #allocation5 [shape = 's32[1]{0}', space=sflag, size = 0x4, scoped, tag = 'scoped memory for maxwell_dense_forward.1']
    #allocation6 [shape = 'u8[1310720]{0}', space=vmem, size = 0x140000, scoped, tag = 'input window, operand 4, single buffered']
    #allocation7 [shape = 'u8[10240]{0}', space=vmem, size = 0x2800, scoped, tag = 'input window, operand 5, single buffered']
    #allocation8 [shape = 's32[1]{0}', space=sflag, size = 0x4, scoped, tag = 'scoped memory for maxwell_dense_forward.1']
    %11 = vsyncpa [#allocation3], 0
    %12 = vsyncpa [#allocation5], 0
    %13 = vsyncpa [#allocation8], 0
    // Predicated region
    $region2: #{maxwell_dense_forward.1} parent=1 // pred_check
      _
    $region3: #{maxwell_dense_forward.1} parent=1 // pred_check_branch
      %15 = sbr.rel (0) target = $region5
    $region4: #{maxwell_dense_forward.1} parent=1 // pred_region
      _
    $region5: #{maxwell_dense_forward.1} parent=1 // pred_fallthru
      _
    // Predicated region
    $region6: #{maxwell_dense_forward.1} parent=1 // pred_check
      _
    $region7: #{maxwell_dense_forward.1} parent=1 // pred_check_branch
      %17 = sbr.rel (0) target = $region9
    $region8: #{maxwell_dense_forward.1} parent=1 // pred_region
      _
    $region9: #{maxwell_dense_forward.1} parent=1 // pred_fallthru
      _
    // Predicated region
    $region10: #{maxwell_dense_forward.1} parent=1 // pred_check
      _
    $region11: #{maxwell_dense_forward.1} parent=1 // pred_check_branch
      %19 = sbr.rel (0) target = $region13
    $region12: #{maxwell_dense_forward.1} parent=1 // pred_region
      %s21 = ssub.s32 2048, 2048
      %22 = vsyncadd [#allocation3], %s21
      %s23 = sshll.u32 [#allocation2], 4
      %s24 = int_to_ptr.vmem [resolvable:$true] %s23
      %29 = dma.hbm_to_vmem [thread:$0]  %s2, 2048, %s24, [#allocation3], 128, 128, 8
    $region13: #{maxwell_dense_forward.1} parent=1 // pred_fallthru
      _
    // Predicated region
    $region14: #{maxwell_dense_forward.1} parent=1 // pred_check
      _
    $region15: #{maxwell_dense_forward.1} parent=1 // pred_check_branch
      %31 = sbr.rel (0) target = $region17
    $region16: #{maxwell_dense_forward.1} parent=1 // pred_region
      %s33 = ssub.s32 32, 32
      %34 = vsyncadd [#allocation5], %s33
      %s36 = sshll.u32 [#allocation4], 4
      %s37 = int_to_ptr.vmem [resolvable:$true] %s36
      %39 = dma.hbm_to_vmem [thread:$0]  %s3, 32, %s37, [#allocation5]
    $region17: #{maxwell_dense_forward.1} parent=1 // pred_fallthru
      _
    // Predicated region
    $region18: #{maxwell_dense_forward.1} parent=1 // pred_check
      _
    $region19: #{maxwell_dense_forward.1} parent=1 // pred_check_branch
      %41 = sbr.rel (0) target = $region21
    $region20: #{maxwell_dense_forward.1} parent=1 // pred_region
      %s43 = ssub.s32 40960, 40960
      %44 = vsyncadd [#allocation5], %s43
      %s45 = sshll.u32 [#allocation6], 4
      %s46 = int_to_ptr.vmem [resolvable:$true] %s45
      %51 = dma.hbm_to_vmem [thread:$0]  %s4, 40960, %s46, [#allocation5], 128, 128, 8
    $region21: #{maxwell_dense_forward.1} parent=1 // pred_fallthru
      _
    // Predicated region
    $region22: #{maxwell_dense_forward.1} parent=1 // pred_check
      _
    $region23: #{maxwell_dense_forward.1} parent=1 // pred_check_branch
      %53 = sbr.rel (0) target = $region25
    $region24: #{maxwell_dense_forward.1} parent=1 // pred_region
      %s55 = ssub.s32 320, 320
      %56 = vsyncadd [#allocation8], %s55
      %s57 = sshll.u32 [#allocation7], 4
      %s58 = int_to_ptr.vmem [resolvable:$true] %s57
      %63 = dma.hbm_to_vmem [thread:$0]  %s5, 320, %s58, [#allocation8], 32, 32, 2
    $region25: #{maxwell_dense_forward.1} parent=1 // pred_fallthru
      _
    // Predicated region
    $region26: #{maxwell_dense_forward.1} parent=1 // pred_check
      _
    $region27: #{maxwell_dense_forward.1} parent=1 // pred_check_branch
      %65 = sbr.rel (0) target = $region29
    $region28: #{maxwell_dense_forward.1} parent=1 // pred_region
      %66 = dma.done [#allocation3], 2048
    $region29: #{maxwell_dense_forward.1} parent=1 // pred_fallthru
      _
    // Predicated region
    $region30: #{maxwell_dense_forward.1} parent=1 // pred_check
      _
    $region31: #{maxwell_dense_forward.1} parent=1 // pred_check_branch
      %68 = sbr.rel (0) target = $region33
    $region32: #{maxwell_dense_forward.1} parent=1 // pred_region
      %69 = dma.done [#allocation5], 32
    $region33: #{maxwell_dense_forward.1} parent=1 // pred_fallthru
      _
    // Predicated region
    $region34: #{maxwell_dense_forward.1} parent=1 // pred_check
      _
    $region35: #{maxwell_dense_forward.1} parent=1 // pred_check_branch
      %71 = sbr.rel (0) target = $region37
    $region36: #{maxwell_dense_forward.1} parent=1 // pred_region
      %72 = dma.done [#allocation5], 40960
    $region37: #{maxwell_dense_forward.1} parent=1 // pred_fallthru
      _
    // Predicated region
    $region38: #{maxwell_dense_forward.1} parent=1 // pred_check
      _
    $region39: #{maxwell_dense_forward.1} parent=1 // pred_check_branch
      %74 = sbr.rel (0) target = $region41
    $region40: #{maxwell_dense_forward.1} parent=1 // pred_region
      %75 = dma.done [#allocation8], 320
    $region41: #{maxwell_dense_forward.1} parent=1 // pred_fallthru
      _
    %v77 = vld [vmem:[%s0] sm:$0xff]
    %v78 = vld [vmem:[%s1] sm:$0xff]
    %v79 = vpack.c.bf16 %v77, %v77
    %v80 = vld [vmem:[#allocation2] sm:$0xff]
    %v81 = vld [vmem:[#allocation2 + $0x8] sm:$0xff]
    %v82 = vld [vmem:[#allocation2 + $0x10] sm:$0xff]
    %v83 = vld [vmem:[#allocation2 + $0x18] sm:$0xff]
    %v84 = vld [vmem:[#allocation2 + $0x20] sm:$0xff]
    %v85 = vld [vmem:[#allocation2 + $0x28] sm:$0xff]
    %v86 = vld [vmem:[#allocation2 + $0x30] sm:$0xff]
    %v87 = vld [vmem:[#allocation2 + $0x38] sm:$0xff]
    %v88 = vld [vmem:[#allocation2 + $0x40] sm:$0xff]
    %v89 = vld [vmem:[#allocation2 + $0x48] sm:$0xff]
    %v90 = vld [vmem:[#allocation2 + $0x50] sm:$0xff]
    %v91 = vld [vmem:[#allocation2 + $0x58] sm:$0xff]
    %v92 = vld [vmem:[#allocation2 + $0x60] sm:$0xff]
    %v93 = vld [vmem:[#allocation2 + $0x68] sm:$0xff]
    %v94 = vld [vmem:[#allocation2 + $0x70] sm:$0xff]
    %v95 = vld [vmem:[#allocation2 + $0x78] sm:$0xff]
    %v96 = vld [vmem:[#allocation4] sm:$0x3]
    %v98 = vlaneseq
    %v99 = vshrl.u32 %v98, 7
    %v100 = vsub.s32 0, %v99
    %v101 = vrot.slane %v96, %v100
    %v102 = vlaneseq
    %v103 = vshrl.u32 %v102, 7
    %v104 = vsub.s32 1, %v103
    %v105 = vrot.slane %v96, %v104
    %v124 = vunpack.c.l.b16 %v80
    %v125 = vunpack.c.h.b16 %v80
    %v126 = vunpack.c.l.b16 %v81
    %v127 = vunpack.c.h.b16 %v81
    %v128 = vunpack.c.l.b16 %v82
    %v129 = vunpack.c.h.b16 %v82
    %v130 = vunpack.c.l.b16 %v83
    %v131 = vunpack.c.h.b16 %v83
    %v132 = vunpack.c.l.b16 %v84
    %v133 = vunpack.c.h.b16 %v84
    %v134 = vunpack.c.l.b16 %v85
    %v135 = vunpack.c.h.b16 %v85
    %v136 = vunpack.c.l.b16 %v86
    %v137 = vunpack.c.h.b16 %v86
    %v138 = vunpack.c.l.b16 %v87
    %v139 = vunpack.c.h.b16 %v87
    %v140 = vunpack.c.l.b16 %v88
    %v141 = vunpack.c.h.b16 %v88
    %v142 = vunpack.c.l.b16 %v89
    %v143 = vunpack.c.h.b16 %v89
    %v144 = vunpack.c.l.b16 %v90
    %v145 = vunpack.c.h.b16 %v90
    %v146 = vunpack.c.l.b16 %v91
    %v147 = vunpack.c.h.b16 %v91
    %v148 = vunpack.c.l.b16 %v92
    %v149 = vunpack.c.h.b16 %v92
    %v150 = vunpack.c.l.b16 %v93
    %v151 = vunpack.c.h.b16 %v93
    %v152 = vunpack.c.l.b16 %v94
    %v153 = vunpack.c.h.b16 %v94
    %v154 = vunpack.c.l.b16 %v95
    %v155 = vunpack.c.h.b16 %v95
    %v156 = vpack.c.b16 %v126, %v124
    %v157 = vpack.c.b16 %v127, %v125
    %v158 = vpack.c.b16 %v130, %v128
    %v159 = vpack.c.b16 %v131, %v129
    %v160 = vpack.c.b16 %v134, %v132
    %v161 = vpack.c.b16 %v135, %v133
    %v162 = vpack.c.b16 %v138, %v136
    %v163 = vpack.c.b16 %v139, %v137
    %v164 = vpack.c.b16 %v142, %v140
    %v165 = vpack.c.b16 %v143, %v141
    %v166 = vpack.c.b16 %v146, %v144
    %v167 = vpack.c.b16 %v147, %v145
    %v168 = vpack.c.b16 %v150, %v148
    %v169 = vpack.c.b16 %v151, %v149
    %v170 = vpack.c.b16 %v154, %v152
    %v171 = vpack.c.b16 %v155, %v153
    %188 = vmatprep.subr.bf16.mxu0 %v171
    %189 = vmatpush1.bf16.msra.mxu0 %v170
    %190 = vmatprep.subr.bf16.mxu0 %v169
    %191 = vmatpush1.bf16.msra.mxu0 %v168
    %192 = vmatprep.subr.bf16.mxu0 %v167
    %193 = vmatpush1.bf16.msra.mxu0 %v166
    %194 = vmatprep.subr.bf16.mxu0 %v165
    %195 = vmatpush1.bf16.msra.mxu0 %v164
    %196 = vmatprep.subr.bf16.mxu0 %v163
    %197 = vmatpush1.bf16.msra.mxu0 %v162
    %198 = vmatprep.subr.bf16.mxu0 %v161
    %199 = vmatpush1.bf16.msra.mxu0 %v160
    %200 = vmatprep.subr.bf16.mxu0 %v159
    %201 = vmatpush1.bf16.msra.mxu0 %v158
    %202 = vmatprep.subr.bf16.mxu0 %v157
    %203 = vmatpush1.bf16.msra.mxu0 %v156
    %204 = vmatprep.subr.bf16.mxu0 0
    %205 = vmatpush2.bf16.msra.mxu0 0
    %206 = vmatprep.subr.bf16.mxu0 0
    %207 = vmatpush2.bf16.msra.mxu0 0
    %208 = vmatprep.subr.bf16.mxu0 0
    %209 = vmatpush2.bf16.msra.mxu0 0
    %210 = vmatprep.subr.bf16.mxu0 0
    %211 = vmatpush2.bf16.msra.mxu0 0
    %212 = vmatprep.subr.bf16.mxu0 0
    %213 = vmatpush2.bf16.msra.mxu0 0
    %214 = vmatprep.subr.bf16.mxu0 0
    %215 = vmatpush2.bf16.msra.mxu0 0
    %216 = vmatprep.subr.bf16.mxu0 0
    %217 = vmatpush2.bf16.msra.mxu0 0
    %218 = vmatprep.subr.bf16.mxu0 0
    %219 = vmatpush2.bf16.msra.mxu0 0
    %220 = vmatprep.mubr.bf16.mxu0 0
    %221 = vmatmul.mubr.bf16.gmra.mxu0 %v79
    %v222 = vpop.f32.mrf.mxu0
    %v223 = vadd.f32 %v101, %v222
    %v224 = vpop.f32.mrf.mxu0
    %v225 = vadd.f32 %v105, %v224
    %v226 = vpop.f32.mrf.mxu0
    %v227 = vpop.f32.mrf.mxu0
    %228 = vdwg.mxu0
    %v229 = vmax.f32 %v223, 0.0
    %v230 = vmax.f32 %v225, 0.0
    %v231 = vld [vmem:[#allocation6] sm:$0xff]
    %v232 = vld [vmem:[#allocation6 + $0x8] sm:$0xff]
    %v233 = vld [vmem:[#allocation6 + $0x10] sm:$0xff]
    %v234 = vld [vmem:[#allocation6 + $0x18] sm:$0xff]
    %v235 = vld [vmem:[#allocation6 + $0x20] sm:$0xff]
    %v236 = vld [vmem:[#allocation6 + $0x28] sm:$0xff]
    %v237 = vld [vmem:[#allocation6 + $0x30] sm:$0xff]
    %v238 = vld [vmem:[#allocation6 + $0x38] sm:$0xff]
    %v239 = vld [vmem:[#allocation6 + $0x40] sm:$0xff]
    %v240 = vld [vmem:[#allocation6 + $0x48] sm:$0xff]
    %v241 = vld [vmem:[#allocation6 + $0x50] sm:$0xff]
    %v242 = vld [vmem:[#allocation6 + $0x58] sm:$0xff]
    %v243 = vld [vmem:[#allocation6 + $0x60] sm:$0xff]
    %v244 = vld [vmem:[#allocation6 + $0x68] sm:$0xff]
    %v245 = vld [vmem:[#allocation6 + $0x70] sm:$0xff]
    %v246 = vld [vmem:[#allocation6 + $0x78] sm:$0xff]
    %v247 = vld [vmem:[#allocation7] sm:$0x3]
    %v248 = vpack.c.bf16 %v229, %v229
    %v250 = vlaneseq
    %v251 = vshrl.u32 %v250, 7
    %v252 = vsub.s32 0, %v251
    %v253 = vrot.slane %v247, %v252
    %v254 = vlaneseq
    %v255 = vshrl.u32 %v254, 7
    %v256 = vsub.s32 1, %v255
    %v257 = vrot.slane %v247, %v256
    %v276 = vunpack.c.l.b16 %v231
    %v277 = vunpack.c.h.b16 %v231
    %v278 = vunpack.c.l.b16 %v232
    %v279 = vunpack.c.h.b16 %v232
    %v280 = vunpack.c.l.b16 %v233
    %v281 = vunpack.c.h.b16 %v233
    %v282 = vunpack.c.l.b16 %v234
    %v283 = vunpack.c.h.b16 %v234
    %v284 = vunpack.c.l.b16 %v235
    %v285 = vunpack.c.h.b16 %v235
    %v286 = vunpack.c.l.b16 %v236
    %v287 = vunpack.c.h.b16 %v236
    %v288 = vunpack.c.l.b16 %v237
    %v289 = vunpack.c.h.b16 %v237
    %v290 = vunpack.c.l.b16 %v238
    %v291 = vunpack.c.h.b16 %v238
    %v292 = vunpack.c.l.b16 %v239
    %v293 = vunpack.c.h.b16 %v239
    %v294 = vunpack.c.l.b16 %v240
    %v295 = vunpack.c.h.b16 %v240
    %v296 = vunpack.c.l.b16 %v241
    %v297 = vunpack.c.h.b16 %v241
    %v298 = vunpack.c.l.b16 %v242
    %v299 = vunpack.c.h.b16 %v242
    %v300 = vunpack.c.l.b16 %v243
    %v301 = vunpack.c.h.b16 %v243
    %v302 = vunpack.c.l.b16 %v244
    %v303 = vunpack.c.h.b16 %v244
    %v304 = vunpack.c.l.b16 %v245
    %v305 = vunpack.c.h.b16 %v245
    %v306 = vunpack.c.l.b16 %v246
    %v307 = vunpack.c.h.b16 %v246
    %v308 = vpack.c.b16 %v278, %v276
    %v309 = vpack.c.b16 %v279, %v277
    %v310 = vpack.c.b16 %v282, %v280
    %v311 = vpack.c.b16 %v283, %v281
    %v312 = vpack.c.b16 %v286, %v284
    %v313 = vpack.c.b16 %v287, %v285
    %v314 = vpack.c.b16 %v290, %v288
    %v315 = vpack.c.b16 %v291, %v289
    %v316 = vpack.c.b16 %v294, %v292
    %v317 = vpack.c.b16 %v295, %v293
    %v318 = vpack.c.b16 %v298, %v296
    %v319 = vpack.c.b16 %v299, %v297
    %v320 = vpack.c.b16 %v302, %v300
    %v321 = vpack.c.b16 %v303, %v301
    %v322 = vpack.c.b16 %v306, %v304
    %v323 = vpack.c.b16 %v307, %v305
    %340 = vmatprep.subr.bf16.mxu0 %v323
    %341 = vmatpush1.bf16.msra.mxu0 %v322
    %342 = vmatprep.subr.bf16.mxu0 %v321
    %343 = vmatpush1.bf16.msra.mxu0 %v320
    %344 = vmatprep.subr.bf16.mxu0 %v319
    %345 = vmatpush1.bf16.msra.mxu0 %v318
    %346 = vmatprep.subr.bf16.mxu0 %v317
    %347 = vmatpush1.bf16.msra.mxu0 %v316
    %348 = vmatprep.subr.bf16.mxu0 %v315
    %349 = vmatpush1.bf16.msra.mxu0 %v314
    %350 = vmatprep.subr.bf16.mxu0 %v313
    %351 = vmatpush1.bf16.msra.mxu0 %v312
    %352 = vmatprep.subr.bf16.mxu0 %v311
    %353 = vmatpush1.bf16.msra.mxu0 %v310
    %354 = vmatprep.subr.bf16.mxu0 %v309
    %355 = vmatpush1.bf16.msra.mxu0 %v308
    %356 = vmatprep.subr.bf16.mxu0 0
    %357 = vmatpush2.bf16.msra.mxu0 0
    %358 = vmatprep.subr.bf16.mxu0 0
    %359 = vmatpush2.bf16.msra.mxu0 0
    %360 = vmatprep.subr.bf16.mxu0 0
    %361 = vmatpush2.bf16.msra.mxu0 0
    %362 = vmatprep.subr.bf16.mxu0 0
    %363 = vmatpush2.bf16.msra.mxu0 0
    %364 = vmatprep.subr.bf16.mxu0 0
    %365 = vmatpush2.bf16.msra.mxu0 0
    %366 = vmatprep.subr.bf16.mxu0 0
    %367 = vmatpush2.bf16.msra.mxu0 0
    %368 = vmatprep.subr.bf16.mxu0 0
    %369 = vmatpush2.bf16.msra.mxu0 0
    %370 = vmatprep.subr.bf16.mxu0 0
    %371 = vmatpush2.bf16.msra.mxu0 0
    %372 = vmatprep.mubr.bf16.mxu0 0
    %373 = vmatmul.mubr.bf16.gmra.mxu0 %v248
    %v374 = vpop.f32.mrf.mxu0
    %v375 = vadd.f32 %v253, %v374
    %v376 = vpop.f32.mrf.mxu0
    %v377 = vadd.f32 %v257, %v376
    %v378 = vpop.f32.mrf.mxu0
    %v379 = vpop.f32.mrf.mxu0
    %380 = vdwg.mxu0
    %v381 = vmax.f32 %v375, 0.0
    %v382 = vmax.f32 %v377, 0.0
    %s383 = scalar_lea.vmem [#allocation6], 256
    %v384 = vld [vmem:[%s383] sm:$0xff]
    %v385 = vld [vmem:[%s383 + $0x8] sm:$0xff]
    %v386 = vld [vmem:[%s383 + $0x10] sm:$0xff]
    %v387 = vld [vmem:[%s383 + $0x18] sm:$0xff]
    %v388 = vld [vmem:[%s383 + $0x20] sm:$0xff]
    %v389 = vld [vmem:[%s383 + $0x28] sm:$0xff]
    %v390 = vld [vmem:[%s383 + $0x30] sm:$0xff]
    %v391 = vld [vmem:[%s383 + $0x38] sm:$0xff]
    %v392 = vld [vmem:[%s383 + $0x40] sm:$0xff]
    %v393 = vld [vmem:[%s383 + $0x48] sm:$0xff]
    %v394 = vld [vmem:[%s383 + $0x50] sm:$0xff]
    %v395 = vld [vmem:[%s383 + $0x58] sm:$0xff]
    %v396 = vld [vmem:[%s383 + $0x60] sm:$0xff]
    %v397 = vld [vmem:[%s383 + $0x68] sm:$0xff]
    %v398 = vld [vmem:[%s383 + $0x70] sm:$0xff]
    %v399 = vld [vmem:[%s383 + $0x78] sm:$0xff]
    %v400 = vld [vmem:[%s383 + $0x80] sm:$0xff]
    %v401 = vld [vmem:[%s383 + $0x88] sm:$0xff]
    %v402 = vld [vmem:[%s383 + $0x90] sm:$0xff]
    %v403 = vld [vmem:[%s383 + $0x98] sm:$0xff]
    %v404 = vld [vmem:[%s383 + $0xa0] sm:$0xff]
    %v405 = vld [vmem:[%s383 + $0xa8] sm:$0xff]
    %v406 = vld [vmem:[%s383 + $0xb0] sm:$0xff]
    %v407 = vld [vmem:[%s383 + $0xb8] sm:$0xff]
    %v408 = vld [vmem:[%s383 + $0xc0] sm:$0xff]
    %v409 = vld [vmem:[%s383 + $0xc8] sm:$0xff]
    %v410 = vld [vmem:[%s383 + $0xd0] sm:$0xff]
    %v411 = vld [vmem:[%s383 + $0xd8] sm:$0xff]
    %v412 = vld [vmem:[%s383 + $0xe0] sm:$0xff]
    %v413 = vld [vmem:[%s383 + $0xe8] sm:$0xff]
    %v414 = vld [vmem:[%s383 + $0xf0] sm:$0xff]
    %v415 = vld [vmem:[%s383 + $0xf8] sm:$0xff]
    %s416 = scalar_lea.vmem [#allocation7], 2
    %v417 = vld [vmem:[%s416] sm:$0x3]
    %v418 = vpack.c.bf16 %v381, %v381
    %v419 = vpack.c.bf16 %v382, %v382
    %v421 = vlaneseq
    %v422 = vshrl.u32 %v421, 7
    %v423 = vsub.s32 0, %v422
    %v424 = vrot.slane %v417, %v423
    %v425 = vlaneseq
    %v426 = vshrl.u32 %v425, 7
    %v427 = vsub.s32 1, %v426
    %v428 = vrot.slane %v417, %v427
    %v463 = vunpack.c.l.b16 %v384
    %v464 = vunpack.c.h.b16 %v384
    %v465 = vunpack.c.l.b16 %v385
    %v466 = vunpack.c.h.b16 %v385
    %v467 = vunpack.c.l.b16 %v386
    %v468 = vunpack.c.h.b16 %v386
    %v469 = vunpack.c.l.b16 %v387
    %v470 = vunpack.c.h.b16 %v387
    %v471 = vunpack.c.l.b16 %v388
    %v472 = vunpack.c.h.b16 %v388
    %v473 = vunpack.c.l.b16 %v389
    %v474 = vunpack.c.h.b16 %v389
    %v475 = vunpack.c.l.b16 %v390
    %v476 = vunpack.c.h.b16 %v390
    %v477 = vunpack.c.l.b16 %v391
    %v478 = vunpack.c.h.b16 %v391
    %v479 = vunpack.c.l.b16 %v392
    %v480 = vunpack.c.h.b16 %v392
    %v481 = vunpack.c.l.b16 %v393
    %v482 = vunpack.c.h.b16 %v393
    %v483 = vunpack.c.l.b16 %v394
    %v484 = vunpack.c.h.b16 %v394
    %v485 = vunpack.c.l.b16 %v395
    %v486 = vunpack.c.h.b16 %v395
    %v487 = vunpack.c.l.b16 %v396
    %v488 = vunpack.c.h.b16 %v396
    %v489 = vunpack.c.l.b16 %v397
    %v490 = vunpack.c.h.b16 %v397
    %v491 = vunpack.c.l.b16 %v398
    %v492 = vunpack.c.h.b16 %v398
    %v493 = vunpack.c.l.b16 %v399
    %v494 = vunpack.c.h.b16 %v399
    %v495 = vunpack.c.l.b16 %v400
    %v496 = vunpack.c.h.b16 %v400
    %v497 = vunpack.c.l.b16 %v401
    %v498 = vunpack.c.h.b16 %v401
    %v499 = vunpack.c.l.b16 %v402
    %v500 = vunpack.c.h.b16 %v402
    %v501 = vunpack.c.l.b16 %v403
    %v502 = vunpack.c.h.b16 %v403
    %v503 = vunpack.c.l.b16 %v404
    %v504 = vunpack.c.h.b16 %v404
    %v505 = vunpack.c.l.b16 %v405
    %v506 = vunpack.c.h.b16 %v405
    %v507 = vunpack.c.l.b16 %v406
    %v508 = vunpack.c.h.b16 %v406
    %v509 = vunpack.c.l.b16 %v407
    %v510 = vunpack.c.h.b16 %v407
    %v511 = vunpack.c.l.b16 %v408
    %v512 = vunpack.c.h.b16 %v408
    %v513 = vunpack.c.l.b16 %v409
    %v514 = vunpack.c.h.b16 %v409
    %v515 = vunpack.c.l.b16 %v410
    %v516 = vunpack.c.h.b16 %v410
    %v517 = vunpack.c.l.b16 %v411
    %v518 = vunpack.c.h.b16 %v411
    %v519 = vunpack.c.l.b16 %v412
    %v520 = vunpack.c.h.b16 %v412
    %v521 = vunpack.c.l.b16 %v413
    %v522 = vunpack.c.h.b16 %v413
    %v523 = vunpack.c.l.b16 %v414
    %v524 = vunpack.c.h.b16 %v414
    %v525 = vunpack.c.l.b16 %v415
    %v526 = vunpack.c.h.b16 %v415
    %v527 = vpack.c.b16 %v465, %v463
    %v528 = vpack.c.b16 %v466, %v464
    %v529 = vpack.c.b16 %v469, %v467
    %v530 = vpack.c.b16 %v470, %v468
    %v531 = vpack.c.b16 %v473, %v471
    %v532 = vpack.c.b16 %v474, %v472
    %v533 = vpack.c.b16 %v477, %v475
    %v534 = vpack.c.b16 %v478, %v476
    %v535 = vpack.c.b16 %v481, %v479
    %v536 = vpack.c.b16 %v482, %v480
    %v537 = vpack.c.b16 %v485, %v483
    %v538 = vpack.c.b16 %v486, %v484
    %v539 = vpack.c.b16 %v489, %v487
    %v540 = vpack.c.b16 %v490, %v488
    %v541 = vpack.c.b16 %v493, %v491
    %v542 = vpack.c.b16 %v494, %v492
    %v543 = vpack.c.b16 %v497, %v495
    %v544 = vpack.c.b16 %v498, %v496
    %v545 = vpack.c.b16 %v501, %v499
    %v546 = vpack.c.b16 %v502, %v500
    %v547 = vpack.c.b16 %v505, %v503
    %v548 = vpack.c.b16 %v506, %v504
    %v549 = vpack.c.b16 %v509, %v507
    %v550 = vpack.c.b16 %v510, %v508
    %v551 = vpack.c.b16 %v513, %v511
    %v552 = vpack.c.b16 %v514, %v512
    %v553 = vpack.c.b16 %v517, %v515
    %v554 = vpack.c.b16 %v518, %v516
    %v555 = vpack.c.b16 %v521, %v519
    %v556 = vpack.c.b16 %v522, %v520
    %v557 = vpack.c.b16 %v525, %v523
    %v558 = vpack.c.b16 %v526, %v524
    %591 = vmatprep.subr.bf16.mxu0 %v542
    %592 = vmatpush1.bf16.msra.mxu0 %v541
    %593 = vmatprep.subr.bf16.mxu0 %v540
    %594 = vmatpush1.bf16.msra.mxu0 %v539
    %595 = vmatprep.subr.bf16.mxu0 %v538
    %596 = vmatpush1.bf16.msra.mxu0 %v537
    %597 = vmatprep.subr.bf16.mxu0 %v536
    %598 = vmatpush1.bf16.msra.mxu0 %v535
    %599 = vmatprep.subr.bf16.mxu0 %v534
    %600 = vmatpush1.bf16.msra.mxu0 %v533
    %601 = vmatprep.subr.bf16.mxu0 %v532
    %602 = vmatpush1.bf16.msra.mxu0 %v531
    %603 = vmatprep.subr.bf16.mxu0 %v530
    %604 = vmatpush1.bf16.msra.mxu0 %v529
    %605 = vmatprep.subr.bf16.mxu0 %v528
    %606 = vmatpush1.bf16.msra.mxu0 %v527
    %607 = vmatprep.subr.bf16.mxu0 %v558
    %608 = vmatpush2.bf16.msra.mxu0 %v557
    %609 = vmatprep.subr.bf16.mxu0 %v556
    %610 = vmatpush2.bf16.msra.mxu0 %v555
    %611 = vmatprep.subr.bf16.mxu0 %v554
    %612 = vmatpush2.bf16.msra.mxu0 %v553
    %613 = vmatprep.subr.bf16.mxu0 %v552
    %614 = vmatpush2.bf16.msra.mxu0 %v551
    %615 = vmatprep.subr.bf16.mxu0 %v550
    %616 = vmatpush2.bf16.msra.mxu0 %v549
    %617 = vmatprep.subr.bf16.mxu0 %v548
    %618 = vmatpush2.bf16.msra.mxu0 %v547
    %619 = vmatprep.subr.bf16.mxu0 %v546
    %620 = vmatpush2.bf16.msra.mxu0 %v545
    %621 = vmatprep.subr.bf16.mxu0 %v544
    %622 = vmatpush2.bf16.msra.mxu0 %v543
    %623 = vmatprep.mubr.bf16.mxu0 %v419
    %624 = vmatmul.mubr.bf16.gmra.mxu0 %v418
    %v625 = vpop.f32.mrf.mxu0
    %v626 = vadd.f32 %v424, %v625
    %v627 = vpop.f32.mrf.mxu0
    %v628 = vadd.f32 %v428, %v627
    %v629 = vpop.f32.mrf.mxu0
    %v630 = vpop.f32.mrf.mxu0
    %631 = vdwg.mxu0
    %v632 = vmax.f32 %v626, 0.0
    %v633 = vmax.f32 %v628, 0.0
    %s634 = scalar_lea.vmem [#allocation6], 512
    %v635 = vld [vmem:[%s634] sm:$0xff]
    %v636 = vld [vmem:[%s634 + $0x8] sm:$0xff]
    %v637 = vld [vmem:[%s634 + $0x10] sm:$0xff]
    %v638 = vld [vmem:[%s634 + $0x18] sm:$0xff]
    %v639 = vld [vmem:[%s634 + $0x20] sm:$0xff]
    %v640 = vld [vmem:[%s634 + $0x28] sm:$0xff]
    %v641 = vld [vmem:[%s634 + $0x30] sm:$0xff]
    %v642 = vld [vmem:[%s634 + $0x38] sm:$0xff]
    %v643 = vld [vmem:[%s634 + $0x40] sm:$0xff]
    %v644 = vld [vmem:[%s634 + $0x48] sm:$0xff]
    %v645 = vld [vmem:[%s634 + $0x50] sm:$0xff]
    %v646 = vld [vmem:[%s634 + $0x58] sm:$0xff]
    %v647 = vld [vmem:[%s634 + $0x60] sm:$0xff]
    %v648 = vld [vmem:[%s634 + $0x68] sm:$0xff]
    %v649 = vld [vmem:[%s634 + $0x70] sm:$0xff]
    %v650 = vld [vmem:[%s634 + $0x78] sm:$0xff]
    %v651 = vld [vmem:[%s634 + $0x80] sm:$0xff]
    %v652 = vld [vmem:[%s634 + $0x88] sm:$0xff]
    %v653 = vld [vmem:[%s634 + $0x90] sm:$0xff]
    %v654 = vld [vmem:[%s634 + $0x98] sm:$0xff]
    %v655 = vld [vmem:[%s634 + $0xa0] sm:$0xff]
    %v656 = vld [vmem:[%s634 + $0xa8] sm:$0xff]
    %v657 = vld [vmem:[%s634 + $0xb0] sm:$0xff]
    %v658 = vld [vmem:[%s634 + $0xb8] sm:$0xff]
    %v659 = vld [vmem:[%s634 + $0xc0] sm:$0xff]
    %v660 = vld [vmem:[%s634 + $0xc8] sm:$0xff]
    %v661 = vld [vmem:[%s634 + $0xd0] sm:$0xff]
    %v662 = vld [vmem:[%s634 + $0xd8] sm:$0xff]
    %v663 = vld [vmem:[%s634 + $0xe0] sm:$0xff]
    %v664 = vld [vmem:[%s634 + $0xe8] sm:$0xff]
    %v665 = vld [vmem:[%s634 + $0xf0] sm:$0xff]
    %v666 = vld [vmem:[%s634 + $0xf8] sm:$0xff]
    %s667 = scalar_lea.vmem [#allocation7], 4
    %v668 = vld [vmem:[%s667] sm:$0x3]
    %v669 = vpack.c.bf16 %v632, %v632
    %v670 = vpack.c.bf16 %v633, %v633
    %v672 = vlaneseq
    %v673 = vshrl.u32 %v672, 7
    %v674 = vsub.s32 0, %v673
    %v675 = vrot.slane %v668, %v674
    %v676 = vlaneseq
    %v677 = vshrl.u32 %v676, 7
    %v678 = vsub.s32 1, %v677
    %v679 = vrot.slane %v668, %v678
    %v714 = vunpack.c.l.b16 %v635
    %v715 = vunpack.c.h.b16 %v635
    %v716 = vunpack.c.l.b16 %v636
    %v717 = vunpack.c.h.b16 %v636
    %v718 = vunpack.c.l.b16 %v637
    %v719 = vunpack.c.h.b16 %v637
    %v720 = vunpack.c.l.b16 %v638
    %v721 = vunpack.c.h.b16 %v638
    %v722 = vunpack.c.l.b16 %v639
    %v723 = vunpack.c.h.b16 %v639
    %v724 = vunpack.c.l.b16 %v640
    %v725 = vunpack.c.h.b16 %v640
    %v726 = vunpack.c.l.b16 %v641
    %v727 = vunpack.c.h.b16 %v641
    %v728 = vunpack.c.l.b16 %v642
    %v729 = vunpack.c.h.b16 %v642
    %v730 = vunpack.c.l.b16 %v643
    %v731 = vunpack.c.h.b16 %v643
    %v732 = vunpack.c.l.b16 %v644
    %v733 = vunpack.c.h.b16 %v644
    %v734 = vunpack.c.l.b16 %v645
    %v735 = vunpack.c.h.b16 %v645
    %v736 = vunpack.c.l.b16 %v646
    %v737 = vunpack.c.h.b16 %v646
    %v738 = vunpack.c.l.b16 %v647
    %v739 = vunpack.c.h.b16 %v647
    %v740 = vunpack.c.l.b16 %v648
    %v741 = vunpack.c.h.b16 %v648
    %v742 = vunpack.c.l.b16 %v649
    %v743 = vunpack.c.h.b16 %v649
    %v744 = vunpack.c.l.b16 %v650
    %v745 = vunpack.c.h.b16 %v650
    %v746 = vunpack.c.l.b16 %v651
    %v747 = vunpack.c.h.b16 %v651
    %v748 = vunpack.c.l.b16 %v652
    %v749 = vunpack.c.h.b16 %v652
    %v750 = vunpack.c.l.b16 %v653
    %v751 = vunpack.c.h.b16 %v653
    %v752 = vunpack.c.l.b16 %v654
    %v753 = vunpack.c.h.b16 %v654
    %v754 = vunpack.c.l.b16 %v655
    %v755 = vunpack.c.h.b16 %v655
    %v756 = vunpack.c.l.b16 %v656
    %v757 = vunpack.c.h.b16 %v656
    %v758 = vunpack.c.l.b16 %v657
    %v759 = vunpack.c.h.b16 %v657
    %v760 = vunpack.c.l.b16 %v658
    %v761 = vunpack.c.h.b16 %v658
    %v762 = vunpack.c.l.b16 %v659
    %v763 = vunpack.c.h.b16 %v659
    %v764 = vunpack.c.l.b16 %v660
    %v765 = vunpack.c.h.b16 %v660
    %v766 = vunpack.c.l.b16 %v661
    %v767 = vunpack.c.h.b16 %v661
    %v768 = vunpack.c.l.b16 %v662
    %v769 = vunpack.c.h.b16 %v662
    %v770 = vunpack.c.l.b16 %v663
    %v771 = vunpack.c.h.b16 %v663
    %v772 = vunpack.c.l.b16 %v664
    %v773 = vunpack.c.h.b16 %v664
    %v774 = vunpack.c.l.b16 %v665
    %v775 = vunpack.c.h.b16 %v665
    %v776 = vunpack.c.l.b16 %v666
    %v777 = vunpack.c.h.b16 %v666
    %v778 = vpack.c.b16 %v716, %v714
    %v779 = vpack.c.b16 %v717, %v715
    %v780 = vpack.c.b16 %v720, %v718
    %v781 = vpack.c.b16 %v721, %v719
    %v782 = vpack.c.b16 %v724, %v722
    %v783 = vpack.c.b16 %v725, %v723
    %v784 = vpack.c.b16 %v728, %v726
    %v785 = vpack.c.b16 %v729, %v727
    %v786 = vpack.c.b16 %v732, %v730
    %v787 = vpack.c.b16 %v733, %v731
    %v788 = vpack.c.b16 %v736, %v734
    %v789 = vpack.c.b16 %v737, %v735
    %v790 = vpack.c.b16 %v740, %v738
    %v791 = vpack.c.b16 %v741, %v739
    %v792 = vpack.c.b16 %v744, %v742
    %v793 = vpack.c.b16 %v745, %v743
    %v794 = vpack.c.b16 %v748, %v746
    %v795 = vpack.c.b16 %v749, %v747
    %v796 = vpack.c.b16 %v752, %v750
    %v797 = vpack.c.b16 %v753, %v751
    %v798 = vpack.c.b16 %v756, %v754
    %v799 = vpack.c.b16 %v757, %v755
    %v800 = vpack.c.b16 %v760, %v758
    %v801 = vpack.c.b16 %v761, %v759
    %v802 = vpack.c.b16 %v764, %v762
    %v803 = vpack.c.b16 %v765, %v763
    %v804 = vpack.c.b16 %v768, %v766
    %v805 = vpack.c.b16 %v769, %v767
    %v806 = vpack.c.b16 %v772, %v770
    %v807 = vpack.c.b16 %v773, %v771
    %v808 = vpack.c.b16 %v776, %v774
    %v809 = vpack.c.b16 %v777, %v775
    %842 = vmatprep.subr.bf16.mxu0 %v793
    %843 = vmatpush1.bf16.msra.mxu0 %v792
    %844 = vmatprep.subr.bf16.mxu0 %v791
    %845 = vmatpush1.bf16.msra.mxu0 %v790
    %846 = vmatprep.subr.bf16.mxu0 %v789
    %847 = vmatpush1.bf16.msra.mxu0 %v788
    %848 = vmatprep.subr.bf16.mxu0 %v787
    %849 = vmatpush1.bf16.msra.mxu0 %v786
    %850 = vmatprep.subr.bf16.mxu0 %v785
    %851 = vmatpush1.bf16.msra.mxu0 %v784
    %852 = vmatprep.subr.bf16.mxu0 %v783
    %853 = vmatpush1.bf16.msra.mxu0 %v782
    %854 = vmatprep.subr.bf16.mxu0 %v781
    %855 = vmatpush1.bf16.msra.mxu0 %v780
    %856 = vmatprep.subr.bf16.mxu0 %v779
    %857 = vmatpush1.bf16.msra.mxu0 %v778
    %858 = vmatprep.subr.bf16.mxu0 %v809
    %859 = vmatpush2.bf16.msra.mxu0 %v808
    %860 = vmatprep.subr.bf16.mxu0 %v807
    %861 = vmatpush2.bf16.msra.mxu0 %v806
    %862 = vmatprep.subr.bf16.mxu0 %v805
    %863 = vmatpush2.bf16.msra.mxu0 %v804
    %864 = vmatprep.subr.bf16.mxu0 %v803
    %865 = vmatpush2.bf16.msra.mxu0 %v802
    %866 = vmatprep.subr.bf16.mxu0 %v801
    %867 = vmatpush2.bf16.msra.mxu0 %v800
    %868 = vmatprep.subr.bf16.mxu0 %v799
    %869 = vmatpush2.bf16.msra.mxu0 %v798
    %870 = vmatprep.subr.bf16.mxu0 %v797
    %871 = vmatpush2.bf16.msra.mxu0 %v796
    %872 = vmatprep.subr.bf16.mxu0 %v795
    %873 = vmatpush2.bf16.msra.mxu0 %v794
    %874 = vmatprep.mubr.bf16.mxu0 %v670
    %875 = vmatmul.mubr.bf16.gmra.mxu0 %v669
    %v876 = vpop.f32.mrf.mxu0
    %v877 = vadd.f32 %v675, %v876
    %v878 = vpop.f32.mrf.mxu0
    %v879 = vadd.f32 %v679, %v878
    %v880 = vpop.f32.mrf.mxu0
    %v881 = vpop.f32.mrf.mxu0
    %882 = vdwg.mxu0
    %v883 = vmax.f32 %v877, 0.0
    %v884 = vmax.f32 %v879, 0.0
    %s885 = scalar_lea.vmem [#allocation6], 768
    %v886 = vld [vmem:[%s885] sm:$0xf]
    %v887 = vld [vmem:[%s885 + $0x8] sm:$0xf]
    %v888 = vld [vmem:[%s885 + $0x10] sm:$0xf]
    %v889 = vld [vmem:[%s885 + $0x18] sm:$0xf]
    %v890 = vld [vmem:[%s885 + $0x20] sm:$0xf]
    %v891 = vld [vmem:[%s885 + $0x28] sm:$0xf]
    %v892 = vld [vmem:[%s885 + $0x30] sm:$0xf]
    %v893 = vld [vmem:[%s885 + $0x38] sm:$0xf]
    %v894 = vld [vmem:[%s885 + $0x40] sm:$0xf]
    %v895 = vld [vmem:[%s885 + $0x48] sm:$0xf]
    %v896 = vld [vmem:[%s885 + $0x50] sm:$0xf]
    %v897 = vld [vmem:[%s885 + $0x58] sm:$0xf]
    %v898 = vld [vmem:[%s885 + $0x60] sm:$0xf]
    %v899 = vld [vmem:[%s885 + $0x68] sm:$0xf]
    %v900 = vld [vmem:[%s885 + $0x70] sm:$0xf]
    %v901 = vld [vmem:[%s885 + $0x78] sm:$0xf]
    %v902 = vld [vmem:[%s885 + $0x80] sm:$0xf]
    %v903 = vld [vmem:[%s885 + $0x88] sm:$0xf]
    %v904 = vld [vmem:[%s885 + $0x90] sm:$0xf]
    %v905 = vld [vmem:[%s885 + $0x98] sm:$0xf]
    %v906 = vld [vmem:[%s885 + $0xa0] sm:$0xf]
    %v907 = vld [vmem:[%s885 + $0xa8] sm:$0xf]
    %v908 = vld [vmem:[%s885 + $0xb0] sm:$0xf]
    %v909 = vld [vmem:[%s885 + $0xb8] sm:$0xf]
    %v910 = vld [vmem:[%s885 + $0xc0] sm:$0xf]
    %v911 = vld [vmem:[%s885 + $0xc8] sm:$0xf]
    %v912 = vld [vmem:[%s885 + $0xd0] sm:$0xf]
    %v913 = vld [vmem:[%s885 + $0xd8] sm:$0xf]
    %v914 = vld [vmem:[%s885 + $0xe0] sm:$0xf]
    %v915 = vld [vmem:[%s885 + $0xe8] sm:$0xf]
    %v916 = vld [vmem:[%s885 + $0xf0] sm:$0xf]
    %v917 = vld [vmem:[%s885 + $0xf8] sm:$0xf]
    %s918 = scalar_lea.vmem [#allocation7], 6
    %v919 = vld [vmem:[%s918] sm:$0x3]
    %v920 = vpack.c.bf16 %v883, %v883
    %v921 = vpack.c.bf16 %v884, %v884
    %v923 = vlaneseq
    %v924 = vshrl.u32 %v923, 7
    %v925 = vsub.s32 0, %v924
    %v926 = vrot.slane %v919, %v925
    %v960 = vunpack.c.l.b16 %v886
    %v961 = vunpack.c.l.b16 %v887
    %v962 = vunpack.c.l.b16 %v888
    %v963 = vunpack.c.l.b16 %v889
    %v964 = vunpack.c.l.b16 %v890
    %v965 = vunpack.c.l.b16 %v891
    %v966 = vunpack.c.l.b16 %v892
    %v967 = vunpack.c.l.b16 %v893
    %v968 = vunpack.c.l.b16 %v894
    %v969 = vunpack.c.l.b16 %v895
    %v970 = vunpack.c.l.b16 %v896
    %v971 = vunpack.c.l.b16 %v897
    %v972 = vunpack.c.l.b16 %v898
    %v973 = vunpack.c.l.b16 %v899
    %v974 = vunpack.c.l.b16 %v900
    %v975 = vunpack.c.l.b16 %v901
    %v976 = vunpack.c.l.b16 %v902
    %v977 = vunpack.c.l.b16 %v903
    %v978 = vunpack.c.l.b16 %v904
    %v979 = vunpack.c.l.b16 %v905
    %v980 = vunpack.c.l.b16 %v906
    %v981 = vunpack.c.l.b16 %v907
    %v982 = vunpack.c.l.b16 %v908
    %v983 = vunpack.c.l.b16 %v909
    %v984 = vunpack.c.l.b16 %v910
    %v985 = vunpack.c.l.b16 %v911
    %v986 = vunpack.c.l.b16 %v912
    %v987 = vunpack.c.l.b16 %v913
    %v988 = vunpack.c.l.b16 %v914
    %v989 = vunpack.c.l.b16 %v915
    %v990 = vunpack.c.l.b16 %v916
    %v991 = vunpack.c.l.b16 %v917
    %v992 = vpack.c.b16 %v961, %v960
    %v993 = vpack.c.b16 %v963, %v962
    %v994 = vpack.c.b16 %v965, %v964
    %v995 = vpack.c.b16 %v967, %v966
    %v996 = vpack.c.b16 %v969, %v968
    %v997 = vpack.c.b16 %v971, %v970
    %v998 = vpack.c.b16 %v973, %v972
    %v999 = vpack.c.b16 %v975, %v974
    %v1000 = vpack.c.b16 %v977, %v976
    %v1001 = vpack.c.b16 %v979, %v978
    %v1002 = vpack.c.b16 %v981, %v980
    %v1003 = vpack.c.b16 %v983, %v982
    %v1004 = vpack.c.b16 %v985, %v984
    %v1005 = vpack.c.b16 %v987, %v986
    %v1006 = vpack.c.b16 %v989, %v988
    %v1007 = vpack.c.b16 %v991, %v990
    %1024 = vmatprep.subr.bf16.mxu0 0
    %1025 = vmatpush1.bf16.msra.mxu0 %v999
    %1026 = vmatprep.subr.bf16.mxu0 0
    %1027 = vmatpush1.bf16.msra.mxu0 %v998
    %1028 = vmatprep.subr.bf16.mxu0 0
    %1029 = vmatpush1.bf16.msra.mxu0 %v997
    %1030 = vmatprep.subr.bf16.mxu0 0
    %1031 = vmatpush1.bf16.msra.mxu0 %v996
    %1032 = vmatprep.subr.bf16.mxu0 0
    %1033 = vmatpush1.bf16.msra.mxu0 %v995
    %1034 = vmatprep.subr.bf16.mxu0 0
    %1035 = vmatpush1.bf16.msra.mxu0 %v994
    %1036 = vmatprep.subr.bf16.mxu0 0
    %1037 = vmatpush1.bf16.msra.mxu0 %v993
    %1038 = vmatprep.subr.bf16.mxu0 0
    %1039 = vmatpush1.bf16.msra.mxu0 %v992
    %1040 = vmatprep.subr.bf16.mxu0 0
    %1041 = vmatpush2.bf16.msra.mxu0 %v1007
    %1042 = vmatprep.subr.bf16.mxu0 0
    %1043 = vmatpush2.bf16.msra.mxu0 %v1006
    %1044 = vmatprep.subr.bf16.mxu0 0
    %1045 = vmatpush2.bf16.msra.mxu0 %v1005
    %1046 = vmatprep.subr.bf16.mxu0 0
    %1047 = vmatpush2.bf16.msra.mxu0 %v1004
    %1048 = vmatprep.subr.bf16.mxu0 0
    %1049 = vmatpush2.bf16.msra.mxu0 %v1003
    %1050 = vmatprep.subr.bf16.mxu0 0
    %1051 = vmatpush2.bf16.msra.mxu0 %v1002
    %1052 = vmatprep.subr.bf16.mxu0 0
    %1053 = vmatpush2.bf16.msra.mxu0 %v1001
    %1054 = vmatprep.subr.bf16.mxu0 0
    %1055 = vmatpush2.bf16.msra.mxu0 %v1000
    %1056 = vmatprep.mubr.bf16.mxu0 %v921
    %1057 = vmatmul.mubr.bf16.gmra.mxu0 %v920
    %v1058 = vpop.f32.mrf.mxu0
    %v1059 = vadd.f32 %v926, %v1058
    %v1060 = vpop.f32.mrf.mxu0
    %v1061 = vpop.f32.mrf.mxu0
    %v1062 = vpop.f32.mrf.mxu0
    %1063 = vdwg.mxu0
    %v1064 = vmax.f32 %v1059, 0.0
    %s1065 = scalar_lea.vmem [#allocation6], 1024
    %v1066 = vld [vmem:[%s1065] sm:$0xf]
    %v1067 = vld [vmem:[%s1065 + $0x8] sm:$0xf]
    %v1068 = vld [vmem:[%s1065 + $0x10] sm:$0xf]
    %v1069 = vld [vmem:[%s1065 + $0x18] sm:$0xf]
    %v1070 = vld [vmem:[%s1065 + $0x20] sm:$0xf]
    %v1071 = vld [vmem:[%s1065 + $0x28] sm:$0xf]
    %v1072 = vld [vmem:[%s1065 + $0x30] sm:$0xf]
    %v1073 = vld [vmem:[%s1065 + $0x38] sm:$0xf]
    %v1074 = vld [vmem:[%s1065 + $0x40] sm:$0xf]
    %v1075 = vld [vmem:[%s1065 + $0x48] sm:$0xf]
    %v1076 = vld [vmem:[%s1065 + $0x50] sm:$0xf]
    %v1077 = vld [vmem:[%s1065 + $0x58] sm:$0xf]
    %v1078 = vld [vmem:[%s1065 + $0x60] sm:$0xf]
    %v1079 = vld [vmem:[%s1065 + $0x68] sm:$0xf]
    %v1080 = vld [vmem:[%s1065 + $0x70] sm:$0xf]
    %v1081 = vld [vmem:[%s1065 + $0x78] sm:$0xf]
    %s1082 = scalar_lea.vmem [#allocation7], 8
    %v1083 = vld [vmem:[%s1082] sm:$0x3]
    %v1084 = vpack.c.bf16 %v1064, %v1064
    %v1086 = vlaneseq
    %v1087 = vshrl.u32 %v1086, 7
    %v1088 = vsub.s32 0, %v1087
    %v1089 = vrot.slane %v1083, %v1088
    %v1107 = vunpack.c.l.b16 %v1066
    %v1108 = vunpack.c.l.b16 %v1067
    %v1109 = vunpack.c.l.b16 %v1068
    %v1110 = vunpack.c.l.b16 %v1069
    %v1111 = vunpack.c.l.b16 %v1070
    %v1112 = vunpack.c.l.b16 %v1071
    %v1113 = vunpack.c.l.b16 %v1072
    %v1114 = vunpack.c.l.b16 %v1073
    %v1115 = vunpack.c.l.b16 %v1074
    %v1116 = vunpack.c.l.b16 %v1075
    %v1117 = vunpack.c.l.b16 %v1076
    %v1118 = vunpack.c.l.b16 %v1077
    %v1119 = vunpack.c.l.b16 %v1078
    %v1120 = vunpack.c.l.b16 %v1079
    %v1121 = vunpack.c.l.b16 %v1080
    %v1122 = vunpack.c.l.b16 %v1081
    %v1123 = vpack.c.b16 %v1108, %v1107
    %v1124 = vpack.c.b16 %v1110, %v1109
    %v1125 = vpack.c.b16 %v1112, %v1111
    %v1126 = vpack.c.b16 %v1114, %v1113
    %v1127 = vpack.c.b16 %v1116, %v1115
    %v1128 = vpack.c.b16 %v1118, %v1117
    %v1129 = vpack.c.b16 %v1120, %v1119
    %v1130 = vpack.c.b16 %v1122, %v1121
    %1139 = vmatprep.subr.bf16.mxu0 0
    %1140 = vmatpush1.bf16.msra.mxu0 %v1130
    %1141 = vmatprep.subr.bf16.mxu0 0
    %1142 = vmatpush1.bf16.msra.mxu0 %v1129
    %1143 = vmatprep.subr.bf16.mxu0 0
    %1144 = vmatpush1.bf16.msra.mxu0 %v1128
    %1145 = vmatprep.subr.bf16.mxu0 0
    %1146 = vmatpush1.bf16.msra.mxu0 %v1127
    %1147 = vmatprep.subr.bf16.mxu0 0
    %1148 = vmatpush1.bf16.msra.mxu0 %v1126
    %1149 = vmatprep.subr.bf16.mxu0 0
    %1150 = vmatpush1.bf16.msra.mxu0 %v1125
    %1151 = vmatprep.subr.bf16.mxu0 0
    %1152 = vmatpush1.bf16.msra.mxu0 %v1124
    %1153 = vmatprep.subr.bf16.mxu0 0
    %1154 = vmatpush1.bf16.msra.mxu0 %v1123
    %1155 = vmatprep.subr.bf16.mxu0 0
    %1156 = vmatpush2.bf16.msra.mxu0 0
    %1157 = vmatprep.subr.bf16.mxu0 0
    %1158 = vmatpush2.bf16.msra.mxu0 0
    %1159 = vmatprep.subr.bf16.mxu0 0
    %1160 = vmatpush2.bf16.msra.mxu0 0
    %1161 = vmatprep.subr.bf16.mxu0 0
    %1162 = vmatpush2.bf16.msra.mxu0 0
    %1163 = vmatprep.subr.bf16.mxu0 0
    %1164 = vmatpush2.bf16.msra.mxu0 0
    %1165 = vmatprep.subr.bf16.mxu0 0
    %1166 = vmatpush2.bf16.msra.mxu0 0
    %1167 = vmatprep.subr.bf16.mxu0 0
    %1168 = vmatpush2.bf16.msra.mxu0 0
    %1169 = vmatprep.subr.bf16.mxu0 0
    %1170 = vmatpush2.bf16.msra.mxu0 0
    %1171 = vmatprep.mubr.bf16.mxu0 0
    %1172 = vmatmul.mubr.bf16.gmra.mxu0 %v1084
    %v1173 = vpop.f32.mrf.mxu0
    %v1174 = vadd.f32 %v1089, %v1173
    %v1175 = vpop.f32.mrf.mxu0
    %v1176 = vpop.f32.mrf.mxu0
    %v1177 = vpop.f32.mrf.mxu0
    %1178 = vdwg.mxu0
    %vm1179 = vcmp.gt.f32.partialorder %v1174, 0.0
    %v1180 = vmin.f32 %v1174, 0.0
    %v1181 = vmul.f32 %v1180, 1.442695
    %v1182 = vpow.pop %v1181
    %v1183 = vsub.f32 %v1182, 1.0
    %v1184 = vsel %vm1179, %v1174, %v1183
    %v1185 = vadd.f32 %v1184, 1.1
    %s1186 = scalar_lea.vmem [#allocation6], 1280
    %v1187 = vld [vmem:[%s1186] sm:$0xff]
    %v1188 = vld [vmem:[%s1186 + $0x8] sm:$0xff]
    %v1189 = vld [vmem:[%s1186 + $0x10] sm:$0xff]
    %v1190 = vld [vmem:[%s1186 + $0x18] sm:$0xff]
    %v1191 = vld [vmem:[%s1186 + $0x20] sm:$0xff]
    %v1192 = vld [vmem:[%s1186 + $0x28] sm:$0xff]
    %v1193 = vld [vmem:[%s1186 + $0x30] sm:$0xff]
    %v1194 = vld [vmem:[%s1186 + $0x38] sm:$0xff]
    %v1195 = vld [vmem:[%s1186 + $0x40] sm:$0xff]
    %v1196 = vld [vmem:[%s1186 + $0x48] sm:$0xff]
    %v1197 = vld [vmem:[%s1186 + $0x50] sm:$0xff]
    %v1198 = vld [vmem:[%s1186 + $0x58] sm:$0xff]
    %v1199 = vld [vmem:[%s1186 + $0x60] sm:$0xff]
    %v1200 = vld [vmem:[%s1186 + $0x68] sm:$0xff]
    %v1201 = vld [vmem:[%s1186 + $0x70] sm:$0xff]
    %v1202 = vld [vmem:[%s1186 + $0x78] sm:$0xff]
    %s1203 = scalar_lea.vmem [#allocation7], 10
    %v1204 = vld [vmem:[%s1203] sm:$0x3]
    %v1205 = vpack.c.bf16 %v230, %v230
    %v1207 = vlaneseq
    %v1208 = vshrl.u32 %v1207, 7
    %v1209 = vsub.s32 0, %v1208
    %v1210 = vrot.slane %v1204, %v1209
    %v1211 = vlaneseq
    %v1212 = vshrl.u32 %v1211, 7
    %v1213 = vsub.s32 1, %v1212
    %v1214 = vrot.slane %v1204, %v1213
    %v1233 = vunpack.c.l.b16 %v1187
    %v1234 = vunpack.c.h.b16 %v1187
    %v1235 = vunpack.c.l.b16 %v1188
    %v1236 = vunpack.c.h.b16 %v1188
    %v1237 = vunpack.c.l.b16 %v1189
    %v1238 = vunpack.c.h.b16 %v1189
    %v1239 = vunpack.c.l.b16 %v1190
    %v1240 = vunpack.c.h.b16 %v1190
    %v1241 = vunpack.c.l.b16 %v1191
    %v1242 = vunpack.c.h.b16 %v1191
    %v1243 = vunpack.c.l.b16 %v1192
    %v1244 = vunpack.c.h.b16 %v1192
    %v1245 = vunpack.c.l.b16 %v1193
    %v1246 = vunpack.c.h.b16 %v1193
    %v1247 = vunpack.c.l.b16 %v1194
    %v1248 = vunpack.c.h.b16 %v1194
    %v1249 = vunpack.c.l.b16 %v1195
    %v1250 = vunpack.c.h.b16 %v1195
    %v1251 = vunpack.c.l.b16 %v1196
    %v1252 = vunpack.c.h.b16 %v1196
    %v1253 = vunpack.c.l.b16 %v1197
    %v1254 = vunpack.c.h.b16 %v1197
    %v1255 = vunpack.c.l.b16 %v1198
    %v1256 = vunpack.c.h.b16 %v1198
    %v1257 = vunpack.c.l.b16 %v1199
    %v1258 = vunpack.c.h.b16 %v1199
    %v1259 = vunpack.c.l.b16 %v1200
    %v1260 = vunpack.c.h.b16 %v1200
    %v1261 = vunpack.c.l.b16 %v1201
    %v1262 = vunpack.c.h.b16 %v1201
    %v1263 = vunpack.c.l.b16 %v1202
    %v1264 = vunpack.c.h.b16 %v1202
    %v1265 = vpack.c.b16 %v1235, %v1233
    %v1266 = vpack.c.b16 %v1236, %v1234
    %v1267 = vpack.c.b16 %v1239, %v1237
    %v1268 = vpack.c.b16 %v1240, %v1238
    %v1269 = vpack.c.b16 %v1243, %v1241
    %v1270 = vpack.c.b16 %v1244, %v1242
    %v1271 = vpack.c.b16 %v1247, %v1245
    %v1272 = vpack.c.b16 %v1248, %v1246
    %v1273 = vpack.c.b16 %v1251, %v1249
    %v1274 = vpack.c.b16 %v1252, %v1250
    %v1275 = vpack.c.b16 %v1255, %v1253
    %v1276 = vpack.c.b16 %v1256, %v1254
    %v1277 = vpack.c.b16 %v1259, %v1257
    %v1278 = vpack.c.b16 %v1260, %v1258
    %v1279 = vpack.c.b16 %v1263, %v1261
    %v1280 = vpack.c.b16 %v1264, %v1262
    %1297 = vmatprep.subr.bf16.mxu0 %v1280
    %1298 = vmatpush1.bf16.msra.mxu0 %v1279
    %1299 = vmatprep.subr.bf16.mxu0 %v1278
    %1300 = vmatpush1.bf16.msra.mxu0 %v1277
    %1301 = vmatprep.subr.bf16.mxu0 %v1276
    %1302 = vmatpush1.bf16.msra.mxu0 %v1275
    %1303 = vmatprep.subr.bf16.mxu0 %v1274
    %1304 = vmatpush1.bf16.msra.mxu0 %v1273
    %1305 = vmatprep.subr.bf16.mxu0 %v1272
    %1306 = vmatpush1.bf16.msra.mxu0 %v1271
    %1307 = vmatprep.subr.bf16.mxu0 %v1270
    %1308 = vmatpush1.bf16.msra.mxu0 %v1269
    %1309 = vmatprep.subr.bf16.mxu0 %v1268
    %1310 = vmatpush1.bf16.msra.mxu0 %v1267
    %1311 = vmatprep.subr.bf16.mxu0 %v1266
    %1312 = vmatpush1.bf16.msra.mxu0 %v1265
    %1313 = vmatprep.subr.bf16.mxu0 0
    %1314 = vmatpush2.bf16.msra.mxu0 0
    %1315 = vmatprep.subr.bf16.mxu0 0
    %1316 = vmatpush2.bf16.msra.mxu0 0
    %1317 = vmatprep.subr.bf16.mxu0 0
    %1318 = vmatpush2.bf16.msra.mxu0 0
    %1319 = vmatprep.subr.bf16.mxu0 0
    %1320 = vmatpush2.bf16.msra.mxu0 0
    %1321 = vmatprep.subr.bf16.mxu0 0
    %1322 = vmatpush2.bf16.msra.mxu0 0
    %1323 = vmatprep.subr.bf16.mxu0 0
    %1324 = vmatpush2.bf16.msra.mxu0 0
    %1325 = vmatprep.subr.bf16.mxu0 0
    %1326 = vmatpush2.bf16.msra.mxu0 0
    %1327 = vmatprep.subr.bf16.mxu0 0
    %1328 = vmatpush2.bf16.msra.mxu0 0
    %1329 = vmatprep.mubr.bf16.mxu0 0
    %1330 = vmatmul.mubr.bf16.gmra.mxu0 %v1205
    %v1331 = vpop.f32.mrf.mxu0
    %v1332 = vadd.f32 %v1210, %v1331
    %v1333 = vpop.f32.mrf.mxu0
    %v1334 = vadd.f32 %v1214, %v1333
    %v1335 = vpop.f32.mrf.mxu0
    %v1336 = vpop.f32.mrf.mxu0
    %1337 = vdwg.mxu0
    %v1338 = vmax.f32 %v1332, 0.0
    %v1339 = vmax.f32 %v1334, 0.0
    %s1340 = scalar_lea.vmem [#allocation6], 1536
    %v1341 = vld [vmem:[%s1340] sm:$0xff]
    %v1342 = vld [vmem:[%s1340 + $0x8] sm:$0xff]
    %v1343 = vld [vmem:[%s1340 + $0x10] sm:$0xff]
    %v1344 = vld [vmem:[%s1340 + $0x18] sm:$0xff]
    %v1345 = vld [vmem:[%s1340 + $0x20] sm:$0xff]
    %v1346 = vld [vmem:[%s1340 + $0x28] sm:$0xff]
    %v1347 = vld [vmem:[%s1340 + $0x30] sm:$0xff]
    %v1348 = vld [vmem:[%s1340 + $0x38] sm:$0xff]
    %v1349 = vld [vmem:[%s1340 + $0x40] sm:$0xff]
    %v1350 = vld [vmem:[%s1340 + $0x48] sm:$0xff]
    %v1351 = vld [vmem:[%s1340 + $0x50] sm:$0xff]
    %v1352 = vld [vmem:[%s1340 + $0x58] sm:$0xff]
    %v1353 = vld [vmem:[%s1340 + $0x60] sm:$0xff]
    %v1354 = vld [vmem:[%s1340 + $0x68] sm:$0xff]
    %v1355 = vld [vmem:[%s1340 + $0x70] sm:$0xff]
    %v1356 = vld [vmem:[%s1340 + $0x78] sm:$0xff]
    %v1357 = vld [vmem:[%s1340 + $0x80] sm:$0xff]
    %v1358 = vld [vmem:[%s1340 + $0x88] sm:$0xff]
    %v1359 = vld [vmem:[%s1340 + $0x90] sm:$0xff]
    %v1360 = vld [vmem:[%s1340 + $0x98] sm:$0xff]
    %v1361 = vld [vmem:[%s1340 + $0xa0] sm:$0xff]
    %v1362 = vld [vmem:[%s1340 + $0xa8] sm:$0xff]
    %v1363 = vld [vmem:[%s1340 + $0xb0] sm:$0xff]
    %v1364 = vld [vmem:[%s1340 + $0xb8] sm:$0xff]
    %v1365 = vld [vmem:[%s1340 + $0xc0] sm:$0xff]
    %v1366 = vld [vmem:[%s1340 + $0xc8] sm:$0xff]
    %v1367 = vld [vmem:[%s1340 + $0xd0] sm:$0xff]
    %v1368 = vld [vmem:[%s1340 + $0xd8] sm:$0xff]
    %v1369 = vld [vmem:[%s1340 + $0xe0] sm:$0xff]
    %v1370 = vld [vmem:[%s1340 + $0xe8] sm:$0xff]
    %v1371 = vld [vmem:[%s1340 + $0xf0] sm:$0xff]
    %v1372 = vld [vmem:[%s1340 + $0xf8] sm:$0xff]
    %s1373 = scalar_lea.vmem [#allocation7], 12
    %v1374 = vld [vmem:[%s1373] sm:$0x3]
    %v1375 = vpack.c.bf16 %v1338, %v1338
    %v1376 = vpack.c.bf16 %v1339, %v1339
    %v1378 = vlaneseq
    %v1379 = vshrl.u32 %v1378, 7
    %v1380 = vsub.s32 0, %v1379
    %v1381 = vrot.slane %v1374, %v1380
    %v1382 = vlaneseq
    %v1383 = vshrl.u32 %v1382, 7
    %v1384 = vsub.s32 1, %v1383
    %v1385 = vrot.slane %v1374, %v1384
    %v1420 = vunpack.c.l.b16 %v1341
    %v1421 = vunpack.c.h.b16 %v1341
    %v1422 = vunpack.c.l.b16 %v1342
    %v1423 = vunpack.c.h.b16 %v1342
    %v1424 = vunpack.c.l.b16 %v1343
    %v1425 = vunpack.c.h.b16 %v1343
    %v1426 = vunpack.c.l.b16 %v1344
    %v1427 = vunpack.c.h.b16 %v1344
    %v1428 = vunpack.c.l.b16 %v1345
    %v1429 = vunpack.c.h.b16 %v1345
    %v1430 = vunpack.c.l.b16 %v1346
    %v1431 = vunpack.c.h.b16 %v1346
    %v1432 = vunpack.c.l.b16 %v1347
    %v1433 = vunpack.c.h.b16 %v1347
    %v1434 = vunpack.c.l.b16 %v1348
    %v1435 = vunpack.c.h.b16 %v1348
    %v1436 = vunpack.c.l.b16 %v1349
    %v1437 = vunpack.c.h.b16 %v1349
    %v1438 = vunpack.c.l.b16 %v1350
    %v1439 = vunpack.c.h.b16 %v1350
    %v1440 = vunpack.c.l.b16 %v1351
    %v1441 = vunpack.c.h.b16 %v1351
    %v1442 = vunpack.c.l.b16 %v1352
    %v1443 = vunpack.c.h.b16 %v1352
    %v1444 = vunpack.c.l.b16 %v1353
    %v1445 = vunpack.c.h.b16 %v1353
    %v1446 = vunpack.c.l.b16 %v1354
    %v1447 = vunpack.c.h.b16 %v1354
    %v1448 = vunpack.c.l.b16 %v1355
    %v1449 = vunpack.c.h.b16 %v1355
    %v1450 = vunpack.c.l.b16 %v1356
    %v1451 = vunpack.c.h.b16 %v1356
    %v1452 = vunpack.c.l.b16 %v1357
    %v1453 = vunpack.c.h.b16 %v1357
    %v1454 = vunpack.c.l.b16 %v1358
    %v1455 = vunpack.c.h.b16 %v1358
    %v1456 = vunpack.c.l.b16 %v1359
    %v1457 = vunpack.c.h.b16 %v1359
    %v1458 = vunpack.c.l.b16 %v1360
    %v1459 = vunpack.c.h.b16 %v1360
    %v1460 = vunpack.c.l.b16 %v1361
    %v1461 = vunpack.c.h.b16 %v1361
    %v1462 = vunpack.c.l.b16 %v1362
    %v1463 = vunpack.c.h.b16 %v1362
    %v1464 = vunpack.c.l.b16 %v1363
    %v1465 = vunpack.c.h.b16 %v1363
    %v1466 = vunpack.c.l.b16 %v1364
    %v1467 = vunpack.c.h.b16 %v1364
    %v1468 = vunpack.c.l.b16 %v1365
    %v1469 = vunpack.c.h.b16 %v1365
    %v1470 = vunpack.c.l.b16 %v1366
    %v1471 = vunpack.c.h.b16 %v1366
    %v1472 = vunpack.c.l.b16 %v1367
    %v1473 = vunpack.c.h.b16 %v1367
    %v1474 = vunpack.c.l.b16 %v1368
    %v1475 = vunpack.c.h.b16 %v1368
    %v1476 = vunpack.c.l.b16 %v1369
    %v1477 = vunpack.c.h.b16 %v1369
    %v1478 = vunpack.c.l.b16 %v1370
    %v1479 = vunpack.c.h.b16 %v1370
    %v1480 = vunpack.c.l.b16 %v1371
    %v1481 = vunpack.c.h.b16 %v1371
    %v1482 = vunpack.c.l.b16 %v1372
    %v1483 = vunpack.c.h.b16 %v1372
    %v1484 = vpack.c.b16 %v1422, %v1420
    %v1485 = vpack.c.b16 %v1423, %v1421
    %v1486 = vpack.c.b16 %v1426, %v1424
    %v1487 = vpack.c.b16 %v1427, %v1425
    %v1488 = vpack.c.b16 %v1430, %v1428
    %v1489 = vpack.c.b16 %v1431, %v1429
    %v1490 = vpack.c.b16 %v1434, %v1432
    %v1491 = vpack.c.b16 %v1435, %v1433
    %v1492 = vpack.c.b16 %v1438, %v1436
    %v1493 = vpack.c.b16 %v1439, %v1437
    %v1494 = vpack.c.b16 %v1442, %v1440
    %v1495 = vpack.c.b16 %v1443, %v1441
    %v1496 = vpack.c.b16 %v1446, %v1444
    %v1497 = vpack.c.b16 %v1447, %v1445
    %v1498 = vpack.c.b16 %v1450, %v1448
    %v1499 = vpack.c.b16 %v1451, %v1449
    %v1500 = vpack.c.b16 %v1454, %v1452
    %v1501 = vpack.c.b16 %v1455, %v1453
    %v1502 = vpack.c.b16 %v1458, %v1456
    %v1503 = vpack.c.b16 %v1459, %v1457
    %v1504 = vpack.c.b16 %v1462, %v1460
    %v1505 = vpack.c.b16 %v1463, %v1461
    %v1506 = vpack.c.b16 %v1466, %v1464
    %v1507 = vpack.c.b16 %v1467, %v1465
    %v1508 = vpack.c.b16 %v1470, %v1468
    %v1509 = vpack.c.b16 %v1471, %v1469
    %v1510 = vpack.c.b16 %v1474, %v1472
    %v1511 = vpack.c.b16 %v1475, %v1473
    %v1512 = vpack.c.b16 %v1478, %v1476
    %v1513 = vpack.c.b16 %v1479, %v1477
    %v1514 = vpack.c.b16 %v1482, %v1480
    %v1515 = vpack.c.b16 %v1483, %v1481
    %1548 = vmatprep.subr.bf16.mxu0 %v1499
    %1549 = vmatpush1.bf16.msra.mxu0 %v1498
    %1550 = vmatprep.subr.bf16.mxu0 %v1497
    %1551 = vmatpush1.bf16.msra.mxu0 %v1496
    %1552 = vmatprep.subr.bf16.mxu0 %v1495
    %1553 = vmatpush1.bf16.msra.mxu0 %v1494
    %1554 = vmatprep.subr.bf16.mxu0 %v1493
    %1555 = vmatpush1.bf16.msra.mxu0 %v1492
    %1556 = vmatprep.subr.bf16.mxu0 %v1491
    %1557 = vmatpush1.bf16.msra.mxu0 %v1490
    %1558 = vmatprep.subr.bf16.mxu0 %v1489
    %1559 = vmatpush1.bf16.msra.mxu0 %v1488
    %1560 = vmatprep.subr.bf16.mxu0 %v1487
    %1561 = vmatpush1.bf16.msra.mxu0 %v1486
    %1562 = vmatprep.subr.bf16.mxu0 %v1485
    %1563 = vmatpush1.bf16.msra.mxu0 %v1484
    %1564 = vmatprep.subr.bf16.mxu0 %v1515
    %1565 = vmatpush2.bf16.msra.mxu0 %v1514
    %1566 = vmatprep.subr.bf16.mxu0 %v1513
    %1567 = vmatpush2.bf16.msra.mxu0 %v1512
    %1568 = vmatprep.subr.bf16.mxu0 %v1511
    %1569 = vmatpush2.bf16.msra.mxu0 %v1510
    %1570 = vmatprep.subr.bf16.mxu0 %v1509
    %1571 = vmatpush2.bf16.msra.mxu0 %v1508
    %1572 = vmatprep.subr.bf16.mxu0 %v1507
    %1573 = vmatpush2.bf16.msra.mxu0 %v1506
    %1574 = vmatprep.subr.bf16.mxu0 %v1505
    %1575 = vmatpush2.bf16.msra.mxu0 %v1504
    %1576 = vmatprep.subr.bf16.mxu0 %v1503
    %1577 = vmatpush2.bf16.msra.mxu0 %v1502
    %1578 = vmatprep.subr.bf16.mxu0 %v1501
    %1579 = vmatpush2.bf16.msra.mxu0 %v1500
    %1580 = vmatprep.mubr.bf16.mxu0 %v1376
    %1581 = vmatmul.mubr.bf16.gmra.mxu0 %v1375
    %v1582 = vpop.f32.mrf.mxu0
    %v1583 = vadd.f32 %v1381, %v1582
    %v1584 = vpop.f32.mrf.mxu0
    %v1585 = vadd.f32 %v1385, %v1584
    %v1586 = vpop.f32.mrf.mxu0
    %v1587 = vpop.f32.mrf.mxu0
    %1588 = vdwg.mxu0
    %v1589 = vmax.f32 %v1583, 0.0
    %v1590 = vmax.f32 %v1585, 0.0
    %s1591 = scalar_lea.vmem [#allocation6], 1792
    %v1592 = vld [vmem:[%s1591] sm:$0xff]
    %v1593 = vld [vmem:[%s1591 + $0x8] sm:$0xff]
    %v1594 = vld [vmem:[%s1591 + $0x10] sm:$0xff]
    %v1595 = vld [vmem:[%s1591 + $0x18] sm:$0xff]
    %v1596 = vld [vmem:[%s1591 + $0x20] sm:$0xff]
    %v1597 = vld [vmem:[%s1591 + $0x28] sm:$0xff]
    %v1598 = vld [vmem:[%s1591 + $0x30] sm:$0xff]
    %v1599 = vld [vmem:[%s1591 + $0x38] sm:$0xff]
    %v1600 = vld [vmem:[%s1591 + $0x40] sm:$0xff]
    %v1601 = vld [vmem:[%s1591 + $0x48] sm:$0xff]
    %v1602 = vld [vmem:[%s1591 + $0x50] sm:$0xff]
    %v1603 = vld [vmem:[%s1591 + $0x58] sm:$0xff]
    %v1604 = vld [vmem:[%s1591 + $0x60] sm:$0xff]
    %v1605 = vld [vmem:[%s1591 + $0x68] sm:$0xff]
    %v1606 = vld [vmem:[%s1591 + $0x70] sm:$0xff]
    %v1607 = vld [vmem:[%s1591 + $0x78] sm:$0xff]
    %v1608 = vld [vmem:[%s1591 + $0x80] sm:$0xff]
    %v1609 = vld [vmem:[%s1591 + $0x88] sm:$0xff]
    %v1610 = vld [vmem:[%s1591 + $0x90] sm:$0xff]
    %v1611 = vld [vmem:[%s1591 + $0x98] sm:$0xff]
    %v1612 = vld [vmem:[%s1591 + $0xa0] sm:$0xff]
    %v1613 = vld [vmem:[%s1591 + $0xa8] sm:$0xff]
    %v1614 = vld [vmem:[%s1591 + $0xb0] sm:$0xff]
    %v1615 = vld [vmem:[%s1591 + $0xb8] sm:$0xff]
    %v1616 = vld [vmem:[%s1591 + $0xc0] sm:$0xff]
    %v1617 = vld [vmem:[%s1591 + $0xc8] sm:$0xff]
    %v1618 = vld [vmem:[%s1591 + $0xd0] sm:$0xff]
    %v1619 = vld [vmem:[%s1591 + $0xd8] sm:$0xff]
    %v1620 = vld [vmem:[%s1591 + $0xe0] sm:$0xff]
    %v1621 = vld [vmem:[%s1591 + $0xe8] sm:$0xff]
    %v1622 = vld [vmem:[%s1591 + $0xf0] sm:$0xff]
    %v1623 = vld [vmem:[%s1591 + $0xf8] sm:$0xff]
    %s1624 = scalar_lea.vmem [#allocation7], 14
    %v1625 = vld [vmem:[%s1624] sm:$0x3]
    %v1626 = vpack.c.bf16 %v1589, %v1589
    %v1627 = vpack.c.bf16 %v1590, %v1590
    %v1629 = vlaneseq
    %v1630 = vshrl.u32 %v1629, 7
    %v1631 = vsub.s32 0, %v1630
    %v1632 = vrot.slane %v1625, %v1631
    %v1633 = vlaneseq
    %v1634 = vshrl.u32 %v1633, 7
    %v1635 = vsub.s32 1, %v1634
    %v1636 = vrot.slane %v1625, %v1635
    %v1671 = vunpack.c.l.b16 %v1592
    %v1672 = vunpack.c.h.b16 %v1592
    %v1673 = vunpack.c.l.b16 %v1593
    %v1674 = vunpack.c.h.b16 %v1593
    %v1675 = vunpack.c.l.b16 %v1594
    %v1676 = vunpack.c.h.b16 %v1594
    %v1677 = vunpack.c.l.b16 %v1595
    %v1678 = vunpack.c.h.b16 %v1595
    %v1679 = vunpack.c.l.b16 %v1596
    %v1680 = vunpack.c.h.b16 %v1596
    %v1681 = vunpack.c.l.b16 %v1597
    %v1682 = vunpack.c.h.b16 %v1597
    %v1683 = vunpack.c.l.b16 %v1598
    %v1684 = vunpack.c.h.b16 %v1598
    %v1685 = vunpack.c.l.b16 %v1599
    %v1686 = vunpack.c.h.b16 %v1599
    %v1687 = vunpack.c.l.b16 %v1600
    %v1688 = vunpack.c.h.b16 %v1600
    %v1689 = vunpack.c.l.b16 %v1601
    %v1690 = vunpack.c.h.b16 %v1601
    %v1691 = vunpack.c.l.b16 %v1602
    %v1692 = vunpack.c.h.b16 %v1602
    %v1693 = vunpack.c.l.b16 %v1603
    %v1694 = vunpack.c.h.b16 %v1603
    %v1695 = vunpack.c.l.b16 %v1604
    %v1696 = vunpack.c.h.b16 %v1604
    %v1697 = vunpack.c.l.b16 %v1605
    %v1698 = vunpack.c.h.b16 %v1605
    %v1699 = vunpack.c.l.b16 %v1606
    %v1700 = vunpack.c.h.b16 %v1606
    %v1701 = vunpack.c.l.b16 %v1607
    %v1702 = vunpack.c.h.b16 %v1607
    %v1703 = vunpack.c.l.b16 %v1608
    %v1704 = vunpack.c.h.b16 %v1608
    %v1705 = vunpack.c.l.b16 %v1609
    %v1706 = vunpack.c.h.b16 %v1609
    %v1707 = vunpack.c.l.b16 %v1610
    %v1708 = vunpack.c.h.b16 %v1610
    %v1709 = vunpack.c.l.b16 %v1611
    %v1710 = vunpack.c.h.b16 %v1611
    %v1711 = vunpack.c.l.b16 %v1612
    %v1712 = vunpack.c.h.b16 %v1612
    %v1713 = vunpack.c.l.b16 %v1613
    %v1714 = vunpack.c.h.b16 %v1613
    %v1715 = vunpack.c.l.b16 %v1614
    %v1716 = vunpack.c.h.b16 %v1614
    %v1717 = vunpack.c.l.b16 %v1615
    %v1718 = vunpack.c.h.b16 %v1615
    %v1719 = vunpack.c.l.b16 %v1616
    %v1720 = vunpack.c.h.b16 %v1616
    %v1721 = vunpack.c.l.b16 %v1617
    %v1722 = vunpack.c.h.b16 %v1617
    %v1723 = vunpack.c.l.b16 %v1618
    %v1724 = vunpack.c.h.b16 %v1618
    %v1725 = vunpack.c.l.b16 %v1619
    %v1726 = vunpack.c.h.b16 %v1619
    %v1727 = vunpack.c.l.b16 %v1620
    %v1728 = vunpack.c.h.b16 %v1620
    %v1729 = vunpack.c.l.b16 %v1621
    %v1730 = vunpack.c.h.b16 %v1621
    %v1731 = vunpack.c.l.b16 %v1622
    %v1732 = vunpack.c.h.b16 %v1622
    %v1733 = vunpack.c.l.b16 %v1623
    %v1734 = vunpack.c.h.b16 %v1623
    %v1735 = vpack.c.b16 %v1673, %v1671
    %v1736 = vpack.c.b16 %v1674, %v1672
    %v1737 = vpack.c.b16 %v1677, %v1675
    %v1738 = vpack.c.b16 %v1678, %v1676
    %v1739 = vpack.c.b16 %v1681, %v1679
    %v1740 = vpack.c.b16 %v1682, %v1680
    %v1741 = vpack.c.b16 %v1685, %v1683
    %v1742 = vpack.c.b16 %v1686, %v1684
    %v1743 = vpack.c.b16 %v1689, %v1687
    %v1744 = vpack.c.b16 %v1690, %v1688
    %v1745 = vpack.c.b16 %v1693, %v1691
    %v1746 = vpack.c.b16 %v1694, %v1692
    %v1747 = vpack.c.b16 %v1697, %v1695
    %v1748 = vpack.c.b16 %v1698, %v1696
    %v1749 = vpack.c.b16 %v1701, %v1699
    %v1750 = vpack.c.b16 %v1702, %v1700
    %v1751 = vpack.c.b16 %v1705, %v1703
    %v1752 = vpack.c.b16 %v1706, %v1704
    %v1753 = vpack.c.b16 %v1709, %v1707
    %v1754 = vpack.c.b16 %v1710, %v1708
    %v1755 = vpack.c.b16 %v1713, %v1711
    %v1756 = vpack.c.b16 %v1714, %v1712
    %v1757 = vpack.c.b16 %v1717, %v1715
    %v1758 = vpack.c.b16 %v1718, %v1716
    %v1759 = vpack.c.b16 %v1721, %v1719
    %v1760 = vpack.c.b16 %v1722, %v1720
    %v1761 = vpack.c.b16 %v1725, %v1723
    %v1762 = vpack.c.b16 %v1726, %v1724
    %v1763 = vpack.c.b16 %v1729, %v1727
    %v1764 = vpack.c.b16 %v1730, %v1728
    %v1765 = vpack.c.b16 %v1733, %v1731
    %v1766 = vpack.c.b16 %v1734, %v1732
    %1799 = vmatprep.subr.bf16.mxu0 %v1750
    %1800 = vmatpush1.bf16.msra.mxu0 %v1749
    %1801 = vmatprep.subr.bf16.mxu0 %v1748
    %1802 = vmatpush1.bf16.msra.mxu0 %v1747
    %1803 = vmatprep.subr.bf16.mxu0 %v1746
    %1804 = vmatpush1.bf16.msra.mxu0 %v1745
    %1805 = vmatprep.subr.bf16.mxu0 %v1744
    %1806 = vmatpush1.bf16.msra.mxu0 %v1743
    %1807 = vmatprep.subr.bf16.mxu0 %v1742
    %1808 = vmatpush1.bf16.msra.mxu0 %v1741
    %1809 = vmatprep.subr.bf16.mxu0 %v1740
    %1810 = vmatpush1.bf16.msra.mxu0 %v1739
    %1811 = vmatprep.subr.bf16.mxu0 %v1738
    %1812 = vmatpush1.bf16.msra.mxu0 %v1737
    %1813 = vmatprep.subr.bf16.mxu0 %v1736
    %1814 = vmatpush1.bf16.msra.mxu0 %v1735
    %1815 = vmatprep.subr.bf16.mxu0 %v1766
    %1816 = vmatpush2.bf16.msra.mxu0 %v1765
    %1817 = vmatprep.subr.bf16.mxu0 %v1764
    %1818 = vmatpush2.bf16.msra.mxu0 %v1763
    %1819 = vmatprep.subr.bf16.mxu0 %v1762
    %1820 = vmatpush2.bf16.msra.mxu0 %v1761
    %1821 = vmatprep.subr.bf16.mxu0 %v1760
    %1822 = vmatpush2.bf16.msra.mxu0 %v1759
    %1823 = vmatprep.subr.bf16.mxu0 %v1758
    %1824 = vmatpush2.bf16.msra.mxu0 %v1757
    %1825 = vmatprep.subr.bf16.mxu0 %v1756
    %1826 = vmatpush2.bf16.msra.mxu0 %v1755
    %1827 = vmatprep.subr.bf16.mxu0 %v1754
    %1828 = vmatpush2.bf16.msra.mxu0 %v1753
    %1829 = vmatprep.subr.bf16.mxu0 %v1752
    %1830 = vmatpush2.bf16.msra.mxu0 %v1751
    %1831 = vmatprep.mubr.bf16.mxu0 %v1627
    %1832 = vmatmul.mubr.bf16.gmra.mxu0 %v1626
    %v1833 = vpop.f32.mrf.mxu0
    %v1834 = vadd.f32 %v1632, %v1833
    %v1835 = vpop.f32.mrf.mxu0
    %v1836 = vadd.f32 %v1636, %v1835
    %v1837 = vpop.f32.mrf.mxu0
    %v1838 = vpop.f32.mrf.mxu0
    %1839 = vdwg.mxu0
    %v1840 = vmax.f32 %v1834, 0.0
    %v1841 = vmax.f32 %v1836, 0.0
    %s1842 = scalar_lea.vmem [#allocation6], 2048
    %v1843 = vld [vmem:[%s1842] sm:$0xf]
    %v1844 = vld [vmem:[%s1842 + $0x8] sm:$0xf]
    %v1845 = vld [vmem:[%s1842 + $0x10] sm:$0xf]
    %v1846 = vld [vmem:[%s1842 + $0x18] sm:$0xf]
    %v1847 = vld [vmem:[%s1842 + $0x20] sm:$0xf]
    %v1848 = vld [vmem:[%s1842 + $0x28] sm:$0xf]
    %v1849 = vld [vmem:[%s1842 + $0x30] sm:$0xf]
    %v1850 = vld [vmem:[%s1842 + $0x38] sm:$0xf]
    %v1851 = vld [vmem:[%s1842 + $0x40] sm:$0xf]
    %v1852 = vld [vmem:[%s1842 + $0x48] sm:$0xf]
    %v1853 = vld [vmem:[%s1842 + $0x50] sm:$0xf]
    %v1854 = vld [vmem:[%s1842 + $0x58] sm:$0xf]
    %v1855 = vld [vmem:[%s1842 + $0x60] sm:$0xf]
    %v1856 = vld [vmem:[%s1842 + $0x68] sm:$0xf]
    %v1857 = vld [vmem:[%s1842 + $0x70] sm:$0xf]
    %v1858 = vld [vmem:[%s1842 + $0x78] sm:$0xf]
    %v1859 = vld [vmem:[%s1842 + $0x80] sm:$0xf]
    %v1860 = vld [vmem:[%s1842 + $0x88] sm:$0xf]
    %v1861 = vld [vmem:[%s1842 + $0x90] sm:$0xf]
    %v1862 = vld [vmem:[%s1842 + $0x98] sm:$0xf]
    %v1863 = vld [vmem:[%s1842 + $0xa0] sm:$0xf]
    %v1864 = vld [vmem:[%s1842 + $0xa8] sm:$0xf]
    %v1865 = vld [vmem:[%s1842 + $0xb0] sm:$0xf]
    %v1866 = vld [vmem:[%s1842 + $0xb8] sm:$0xf]
    %v1867 = vld [vmem:[%s1842 + $0xc0] sm:$0xf]
    %v1868 = vld [vmem:[%s1842 + $0xc8] sm:$0xf]
    %v1869 = vld [vmem:[%s1842 + $0xd0] sm:$0xf]
    %v1870 = vld [vmem:[%s1842 + $0xd8] sm:$0xf]
    %v1871 = vld [vmem:[%s1842 + $0xe0] sm:$0xf]
    %v1872 = vld [vmem:[%s1842 + $0xe8] sm:$0xf]
    %v1873 = vld [vmem:[%s1842 + $0xf0] sm:$0xf]
    %v1874 = vld [vmem:[%s1842 + $0xf8] sm:$0xf]
    %s1875 = scalar_lea.vmem [#allocation7], 16
    %v1876 = vld [vmem:[%s1875] sm:$0x3]
    %v1877 = vpack.c.bf16 %v1840, %v1840
    %v1878 = vpack.c.bf16 %v1841, %v1841
    %v1880 = vlaneseq
    %v1881 = vshrl.u32 %v1880, 7
    %v1882 = vsub.s32 0, %v1881
    %v1883 = vrot.slane %v1876, %v1882
    %v1917 = vunpack.c.l.b16 %v1843
    %v1918 = vunpack.c.l.b16 %v1844
    %v1919 = vunpack.c.l.b16 %v1845
    %v1920 = vunpack.c.l.b16 %v1846
    %v1921 = vunpack.c.l.b16 %v1847
    %v1922 = vunpack.c.l.b16 %v1848
    %v1923 = vunpack.c.l.b16 %v1849
    %v1924 = vunpack.c.l.b16 %v1850
    %v1925 = vunpack.c.l.b16 %v1851
    %v1926 = vunpack.c.l.b16 %v1852
    %v1927 = vunpack.c.l.b16 %v1853
    %v1928 = vunpack.c.l.b16 %v1854
    %v1929 = vunpack.c.l.b16 %v1855
    %v1930 = vunpack.c.l.b16 %v1856
    %v1931 = vunpack.c.l.b16 %v1857
    %v1932 = vunpack.c.l.b16 %v1858
    %v1933 = vunpack.c.l.b16 %v1859
    %v1934 = vunpack.c.l.b16 %v1860
    %v1935 = vunpack.c.l.b16 %v1861
    %v1936 = vunpack.c.l.b16 %v1862
    %v1937 = vunpack.c.l.b16 %v1863
    %v1938 = vunpack.c.l.b16 %v1864
    %v1939 = vunpack.c.l.b16 %v1865
    %v1940 = vunpack.c.l.b16 %v1866
    %v1941 = vunpack.c.l.b16 %v1867
    %v1942 = vunpack.c.l.b16 %v1868
    %v1943 = vunpack.c.l.b16 %v1869
    %v1944 = vunpack.c.l.b16 %v1870
    %v1945 = vunpack.c.l.b16 %v1871
    %v1946 = vunpack.c.l.b16 %v1872
    %v1947 = vunpack.c.l.b16 %v1873
    %v1948 = vunpack.c.l.b16 %v1874
    %v1949 = vpack.c.b16 %v1918, %v1917
    %v1950 = vpack.c.b16 %v1920, %v1919
    %v1951 = vpack.c.b16 %v1922, %v1921
    %v1952 = vpack.c.b16 %v1924, %v1923
    %v1953 = vpack.c.b16 %v1926, %v1925
    %v1954 = vpack.c.b16 %v1928, %v1927
    %v1955 = vpack.c.b16 %v1930, %v1929
    %v1956 = vpack.c.b16 %v1932, %v1931
    %v1957 = vpack.c.b16 %v1934, %v1933
    %v1958 = vpack.c.b16 %v1936, %v1935
    %v1959 = vpack.c.b16 %v1938, %v1937
    %v1960 = vpack.c.b16 %v1940, %v1939
    %v1961 = vpack.c.b16 %v1942, %v1941
    %v1962 = vpack.c.b16 %v1944, %v1943
    %v1963 = vpack.c.b16 %v1946, %v1945
    %v1964 = vpack.c.b16 %v1948, %v1947
    %1981 = vmatprep.subr.bf16.mxu0 0
    %1982 = vmatpush1.bf16.msra.mxu0 %v1956
    %1983 = vmatprep.subr.bf16.mxu0 0
    %1984 = vmatpush1.bf16.msra.mxu0 %v1955
    %1985 = vmatprep.subr.bf16.mxu0 0
    %1986 = vmatpush1.bf16.msra.mxu0 %v1954
    %1987 = vmatprep.subr.bf16.mxu0 0
    %1988 = vmatpush1.bf16.msra.mxu0 %v1953
    %1989 = vmatprep.subr.bf16.mxu0 0
    %1990 = vmatpush1.bf16.msra.mxu0 %v1952
    %1991 = vmatprep.subr.bf16.mxu0 0
    %1992 = vmatpush1.bf16.msra.mxu0 %v1951
    %1993 = vmatprep.subr.bf16.mxu0 0
    %1994 = vmatpush1.bf16.msra.mxu0 %v1950
    %1995 = vmatprep.subr.bf16.mxu0 0
    %1996 = vmatpush1.bf16.msra.mxu0 %v1949
    %1997 = vmatprep.subr.bf16.mxu0 0
    %1998 = vmatpush2.bf16.msra.mxu0 %v1964
    %1999 = vmatprep.subr.bf16.mxu0 0
    %2000 = vmatpush2.bf16.msra.mxu0 %v1963
    %2001 = vmatprep.subr.bf16.mxu0 0
    %2002 = vmatpush2.bf16.msra.mxu0 %v1962
    %2003 = vmatprep.subr.bf16.mxu0 0
    %2004 = vmatpush2.bf16.msra.mxu0 %v1961
    %2005 = vmatprep.subr.bf16.mxu0 0
    %2006 = vmatpush2.bf16.msra.mxu0 %v1960
    %2007 = vmatprep.subr.bf16.mxu0 0
    %2008 = vmatpush2.bf16.msra.mxu0 %v1959
    %2009 = vmatprep.subr.bf16.mxu0 0
    %2010 = vmatpush2.bf16.msra.mxu0 %v1958
    %2011 = vmatprep.subr.bf16.mxu0 0
    %2012 = vmatpush2.bf16.msra.mxu0 %v1957
    %2013 = vmatprep.mubr.bf16.mxu0 %v1878
    %2014 = vmatmul.mubr.bf16.gmra.mxu0 %v1877
    %v2015 = vpop.f32.mrf.mxu0
    %v2016 = vadd.f32 %v1883, %v2015
    %v2017 = vpop.f32.mrf.mxu0
    %v2018 = vpop.f32.mrf.mxu0
    %v2019 = vpop.f32.mrf.mxu0
    %2020 = vdwg.mxu0
    %v2021 = vmax.f32 %v2016, 0.0
    %s2022 = scalar_lea.vmem [#allocation6], 2304
    %v2023 = vld [vmem:[%s2022] sm:$0xf]
    %v2024 = vld [vmem:[%s2022 + $0x8] sm:$0xf]
    %v2025 = vld [vmem:[%s2022 + $0x10] sm:$0xf]
    %v2026 = vld [vmem:[%s2022 + $0x18] sm:$0xf]
    %v2027 = vld [vmem:[%s2022 + $0x20] sm:$0xf]
    %v2028 = vld [vmem:[%s2022 + $0x28] sm:$0xf]
    %v2029 = vld [vmem:[%s2022 + $0x30] sm:$0xf]
    %v2030 = vld [vmem:[%s2022 + $0x38] sm:$0xf]
    %v2031 = vld [vmem:[%s2022 + $0x40] sm:$0xf]
    %v2032 = vld [vmem:[%s2022 + $0x48] sm:$0xf]
    %v2033 = vld [vmem:[%s2022 + $0x50] sm:$0xf]
    %v2034 = vld [vmem:[%s2022 + $0x58] sm:$0xf]
    %v2035 = vld [vmem:[%s2022 + $0x60] sm:$0xf]
    %v2036 = vld [vmem:[%s2022 + $0x68] sm:$0xf]
    %v2037 = vld [vmem:[%s2022 + $0x70] sm:$0xf]
    %v2038 = vld [vmem:[%s2022 + $0x78] sm:$0xf]
    %s2039 = scalar_lea.vmem [#allocation7], 18
    %v2040 = vld [vmem:[%s2039] sm:$0x3]
    %v2041 = vpack.c.bf16 %v2021, %v2021
    %v2043 = vlaneseq
    %v2044 = vshrl.u32 %v2043, 7
    %v2045 = vsub.s32 0, %v2044
    %v2046 = vrot.slane %v2040, %v2045
    %v2064 = vunpack.c.l.b16 %v2023
    %v2065 = vunpack.c.l.b16 %v2024
    %v2066 = vunpack.c.l.b16 %v2025
    %v2067 = vunpack.c.l.b16 %v2026
    %v2068 = vunpack.c.l.b16 %v2027
    %v2069 = vunpack.c.l.b16 %v2028
    %v2070 = vunpack.c.l.b16 %v2029
    %v2071 = vunpack.c.l.b16 %v2030
    %v2072 = vunpack.c.l.b16 %v2031
    %v2073 = vunpack.c.l.b16 %v2032
    %v2074 = vunpack.c.l.b16 %v2033
    %v2075 = vunpack.c.l.b16 %v2034
    %v2076 = vunpack.c.l.b16 %v2035
    %v2077 = vunpack.c.l.b16 %v2036
    %v2078 = vunpack.c.l.b16 %v2037
    %v2079 = vunpack.c.l.b16 %v2038
    %v2080 = vpack.c.b16 %v2065, %v2064
    %v2081 = vpack.c.b16 %v2067, %v2066
    %v2082 = vpack.c.b16 %v2069, %v2068
    %v2083 = vpack.c.b16 %v2071, %v2070
    %v2084 = vpack.c.b16 %v2073, %v2072
    %v2085 = vpack.c.b16 %v2075, %v2074
    %v2086 = vpack.c.b16 %v2077, %v2076
    %v2087 = vpack.c.b16 %v2079, %v2078
    %2096 = vmatprep.subr.bf16.mxu0 0
    %2097 = vmatpush1.bf16.msra.mxu0 %v2087
    %2098 = vmatprep.subr.bf16.mxu0 0
    %2099 = vmatpush1.bf16.msra.mxu0 %v2086
    %2100 = vmatprep.subr.bf16.mxu0 0
    %2101 = vmatpush1.bf16.msra.mxu0 %v2085
    %2102 = vmatprep.subr.bf16.mxu0 0
    %2103 = vmatpush1.bf16.msra.mxu0 %v2084
    %2104 = vmatprep.subr.bf16.mxu0 0
    %2105 = vmatpush1.bf16.msra.mxu0 %v2083
    %2106 = vmatprep.subr.bf16.mxu0 0
    %2107 = vmatpush1.bf16.msra.mxu0 %v2082
    %2108 = vmatprep.subr.bf16.mxu0 0
    %2109 = vmatpush1.bf16.msra.mxu0 %v2081
    %2110 = vmatprep.subr.bf16.mxu0 0
    %2111 = vmatpush1.bf16.msra.mxu0 %v2080
    %2112 = vmatprep.subr.bf16.mxu0 0
    %2113 = vmatpush2.bf16.msra.mxu0 0
    %2114 = vmatprep.subr.bf16.mxu0 0
    %2115 = vmatpush2.bf16.msra.mxu0 0
    %2116 = vmatprep.subr.bf16.mxu0 0
    %2117 = vmatpush2.bf16.msra.mxu0 0
    %2118 = vmatprep.subr.bf16.mxu0 0
    %2119 = vmatpush2.bf16.msra.mxu0 0
    %2120 = vmatprep.subr.bf16.mxu0 0
    %2121 = vmatpush2.bf16.msra.mxu0 0
    %2122 = vmatprep.subr.bf16.mxu0 0
    %2123 = vmatpush2.bf16.msra.mxu0 0
    %2124 = vmatprep.subr.bf16.mxu0 0
    %2125 = vmatpush2.bf16.msra.mxu0 0
    %2126 = vmatprep.subr.bf16.mxu0 0
    %2127 = vmatpush2.bf16.msra.mxu0 0
    %2128 = vmatprep.mubr.bf16.mxu0 0
    %2129 = vmatmul.mubr.bf16.gmra.mxu0 %v2041
    %v2130 = vpop.f32.mrf.mxu0
    %v2131 = vadd.f32 %v2046, %v2130
    %v2132 = vpop.f32.mrf.mxu0
    %v2133 = vpop.f32.mrf.mxu0
    %v2134 = vpop.f32.mrf.mxu0
    %2135 = vdwg.mxu0
    %v2136 = vtanh.pop %v2131
    %v2137 = vmul.f32 %v2136, 6.2831855
    %v2138 = vlaneseq
    %v2139 = vand.u32 %v2138, 127
    %vm2140 = vcmp.lt.s32.totalorder %v2139, 64
    %v2141 = vadd.f32 %v78, %v2137
    %v2142 = vand.u32 2147483647, %v2141
    %vm2143 = vcmp.le.f32.partialorder %v2142, 0.7853982
    %vm2144 = vcmp.lt.s32.totalorder %v2141, 0
    %v2145 = vand.u32 %v2141, 2139095040
    %v2146 = vshrl.u32 %v2145, 23
    %v2147 = vsub.s32 %v2146, 127
    %v2148 = vand.u32 2147483647, %v2141
    %v2149 = vand.u32 %v2148, 8388607
    %v2150 = vor.u32 %v2149, 8388608
    %v2151 = vsub.s32 0, %v2150
    %v2152 = vadd.s32 %v2147, 1
    %vm2153 = vcmp.gt.s32.totalorder %v2152, 0
    %v2154 = vsel %vm2153, %v2152, 0
    %v2155 = vshrl.u32 %v2154, 5
    %v2156 = vand.u32 %v2154, 31
    %v2157 = vsub.s32 32, %v2156
    %v2158 = vshrl.u32 683565275, %v2157
    %v2159 = vshll.u32 683565275, %v2156
    %v2160 = vshrl.u32 2475754826, %v2157
    %v2161 = vor.u32 %v2159, %v2160
    %v2162 = vshll.u32 2475754826, %v2156
    %v2163 = vshrl.u32 2131351028, %v2157
    %v2164 = vor.u32 %v2162, %v2163
    %v2165 = vshll.u32 2131351028, %v2156
    %v2166 = vshrl.u32 2102212464, %v2157
    %v2167 = vor.u32 %v2165, %v2166
    %v2168 = vshll.u32 2102212464, %v2156
    %v2169 = vshrl.u32 920167782, %v2157
    %v2170 = vor.u32 %v2168, %v2169
    %v2171 = vshll.u32 920167782, %v2156
    %v2172 = vshrl.u32 1326507024, %v2157
    %v2173 = vor.u32 %v2171, %v2172
    %vm2174 = vcmp.lt.s32.totalorder %v2155, 1
    %vm2175 = vcmp.lt.s32.totalorder %v2155, 2
    %vm2176 = vcmp.lt.s32.totalorder %v2155, 3
    %vm2177 = vcmp.lt.s32.totalorder %v2155, 4
    %v2178 = vsel %vm2174, %v2158, %v2161
    %v2179 = vsel %vm2177, %v2167, 2102212464
    %v2180 = vsel %vm2176, %v2164, %v2179
    %v2181 = vsel %vm2175, %v2178, %v2180
    %v2182 = vsel %vm2174, %v2161, %v2164
    %v2183 = vsel %vm2177, %v2170, 920167782
    %v2184 = vsel %vm2176, %v2167, %v2183
    %v2185 = vsel %vm2175, %v2182, %v2184
    %v2186 = vsel %vm2174, %v2164, %v2167
    %v2187 = vsel %vm2177, %v2173, 1326507024
    %v2188 = vsel %vm2176, %v2170, %v2187
    %v2189 = vsel %vm2175, %v2186, %v2188
    %v2190 = vshll.u32 %v2150, 8
    %v2191 = vmul.u32.u64.compose %v2190, %v2189
    %v2192 = vextract.low.u32 %v2191
    %v2193 = vextract.high.u32 %v2191
    %v2194 = vmul.u32.u64.compose %v2190, %v2185
    %v2195 = vextract.low.u32 %v2194
    %v2196 = vextract.high.u32 %v2194
    %v2197 = vmul.u32 %v2190, %v2181
    %v2198 = vadd.s32 %v2193, %v2195
    %vm2199 = vc.u32 %v2193, %v2195
    %v2200 = vadd.s32 %v2196, 1
    %v2201 = vsel %vm2199, %v2200, %v2196
    %v2202 = vadd.s32 %v2197, %v2201
    %v2203 = vadd.s32 %v2202, 536870912
    %v2204 = vshrl.u32 %v2203, 30
    %v2205 = vshll.u32 %v2204, 30
    %v2206 = vsub.s32 %v2202, %v2205
    %vm2207 = vcmp.lt.s32.totalorder %v2206, 0
    %v2208 = vsub.s32 0, %v2206
    %v2209 = vsel %vm2207, %v2208, %v2206
    %v2210 = vclz %v2209
    %v2211 = vsub.s32 %v2210, 2
    %vm2212 = vcmp.gt.s32.totalorder 0, %v2211
    %v2213 = vsel %vm2212, 0, %v2211
    %v2214 = vsub.s32 32, %v2213
    %v2215 = vshll.u32 %v2206, %v2213
    %v2216 = vshrl.u32 %v2198, %v2214
    %v2217 = vor.u32 %v2215, %v2216
    %v2218 = vsub.s32 4294967266, %v2213
    %v2219 = vadd.s32 %v2218, 127
    %v2220 = vshll.u32 %v2219, 23
    %v2221 = vor.u32 4788187, %v2220
    %v2222 = vand.u32 2147483647, %v2221
    %v2224 = vcvt.s32.f32 %v2217
    %v2225 = vmul.f32 %v2224, %v2222
    %v2226 = vxor.u32 %v2225, 2147483648
    %v2227 = vsel %vm2144, %v2226, %v2225
    %v2228 = vsub.s32 4, %v2204
    %v2229 = vsel %vm2144, %v2228, %v2204
    %v2230 = vsel %vm2143, %v2141, %v2227
    %v2231 = vsel %vm2143, 0, %v2229
    %v2232 = vcosq.f32.pop %v2230
    %v2233 = vsinq.f32.pop %v2230
    %vm2234 = vweird.f32 %v2141
    %v2235 = vand.u32 %v2231, 3
    %vm2236 = vcmp.lt.s32.totalorder %v2235, 2
    %vm2237 = vcmp.eq.s32.totalorder %v2235, 0
    %v2238 = vxor.u32 %v2233, 2147483648
    %v2239 = vsel %vm2237, %v2232, %v2238
    %vm2240 = vcmp.eq.s32.totalorder %v2235, 2
    %v2241 = vxor.u32 %v2232, 2147483648
    %v2242 = vsel %vm2240, %v2241, %v2233
    %v2243 = vsel %vm2236, %v2239, %v2242
    %v2244 = vsel %vm2234, nan, %v2243
    %v2245 = vmul.f32 %v1185, %v2244
    %v2246 = vsel %vm2140, %v2245, 0.0
    %2247 = vrot.lane.b32.xlu0 %v2246, 1
    %v2248 = vpop.permute.xlu0 %2247
    %2249 = vrot.lane.b32.xlu0 %v2246, 127
    %v2250 = vpop.permute.xlu0 %2249
    %v2251 = vmul.f32 %v2246, 2.0
    %v2252 = vsub.f32 %v2248, %v2251
    %v2253 = vadd.f32 %v2252, %v2250
    %vm2254 = vcmp.eq.s32.totalorder %v2139, 32
    %v2255 = vsel %vm2254, 1.526814, 0.0
    %v2256 = vmul.f32 %v2253, 0.4
    %v2257 = vmul.f32 %v77, -0.016432224
    %v2258 = vmul.f32 %v2257, %v2246
    %v2259 = vsub.f32 %v2256, %v2258
    %v2260 = vsub.f32 %v2259, %v2255
    %vm2261 = vcmp.le.s32.totalorder %v2139, 62
    %2262 = vrot.lane.b32.xlu0 %v1185, 127
    %v2263 = vpop.permute.xlu0 %2262
    %v2264 = vsub.f32 %v2263, %v1185
    %v2265 = vsel %vm2261, %v2264, 0.0
    %2266 = vrot.lane.b32.xlu0 %v77, 127
    %v2267 = vpop.permute.xlu0 %2266
    %v2268 = vsub.f32 %v2267, %v77
    %v2269 = vsel %vm2261, %v2268, 0.0
    %v2270 = vand.u32 2147483647, %v2265
    %2271 = vadd.xlane.f32.xlu0 %v2270
    %v2272 = vpop.xlane.xlu0 %2271
    %v2273 = vand.u32 2147483647, %v2269
    %2274 = vadd.xlane.f32.xlu0 %v2273
    %v2275 = vpop.xlane.xlu0 %2274
    %v2276 = vadd.f32 %v2275, 1.0
    %v2277 = vrcp.pop %v2276
    %v2278 = vmul.f32 0.1, %v2277
    %v2279 = vsel %vm2140, %v2260, 0.0
    %vm2280 = vcmp.eq.s32.totalorder %v2139, 65
    %v2281 = vmul.f32 %v2278, %v2272
    %v2282 = vsel %vm2280, %v2281, 0.0
    %v2283 = vadd.f32 %v2279, %v2282
    %2284 = vst [vmem:[%s6] sm:$0xff] %v2283
    // Predicated region
    $region42: #{maxwell_dense_forward.1} parent=1 // pred_check
      _
    $region43: #{maxwell_dense_forward.1} parent=1 // pred_check_branch
      %2286 = sbr.rel (0) target = $region45
    $region44: #{maxwell_dense_forward.1} parent=1 // pred_region
      _
    $region45: #{maxwell_dense_forward.1} parent=1 // pred_fallthru
      _
    // Predicated region
    $region46: #{maxwell_dense_forward.1} parent=1 // pred_check
      _
    $region47: #{maxwell_dense_forward.1} parent=1 // pred_check_branch
      %2288 = sbr.rel (0) target = $region49
    $region48: #{maxwell_dense_forward.1} parent=1 // pred_region
      _
    $region49: #{maxwell_dense_forward.1} parent=1 // pred_fallthru
      _
    %2289 = vsyncpa [#allocation3], 1
    %2290 = vsyncpa [#allocation5], 1
    %2291 = vsyncpa [#allocation8], 1

</llo_original>
